<compile_context>
chip_gen: v6e
topology: v6e:2x2x1
jax: 0.10.0
libtpu: 0.0.40
codegen_flags: <defaults>
</compile_context>

<pallas_src>
import numpy as np

import jax
import jax.numpy as jnp
from jax.experimental import pallas as pl
from jax.experimental.pallas import tpu as pltpu


# -----------------------------------------------------------------------------
# Fused kernel (one batch group per grid step; default: whole batch in 1 step).
#   x_ref     : (1, Cin,   nb*H*W)    bf16   full-res input, lanes = (n, h, w)
#   xs_ref    : (1, 4*Cin, nb*Hh*Wh)  bf16   space-to-depth of x (theta input)
#   g_ref     : (1, Cg,    nb*Hh*Wh)  bf16   gating signal
#   wth_ref   : (Cinter, 4*Cin)       bf16   theta 2x2/s2 conv, flattened
#   wphi_ref  : (Cinter, Cg)          bf16   phi 1x1 conv
#   bphi_ref  : (Cinter, 1)           f32
#   wpsi_ref  : (Cinter, 1)           f32    psi 1x1 conv (VPU column)
#   bpsi_ref  : (1, 1)                f32
#   uwT_ref   : (Wh, W)               f32    U_w^T  (bilinear, align_corners=T)
#   uhk_ref   : (nb*H, nb*Hh)         f32    kron(I_nb, U_h)
#   wout_ref  : (Cin, Cin)            bf16   out_transform 1x1 conv
#   scale_ref : (Cin, 1)              f32    BN scale (eval fold)
#   shift_ref : (Cin, 1)              f32    BN shift (conv bias folded in)
#   o_ref     : (1, Cin, nb*H*W)      bf16
# Scratch (all VMEM, f32):
#   attn_scr  : (1, nb*Hh*Wh)   mat_scr : (nb*Hh, Wh)
#   up_scr    : (nb*H, W)       aup_scr : (1, nb*H*W)
# -----------------------------------------------------------------------------
def attention_block_kernel(x_ref, xs_ref, g_ref,
                           wth_ref, wphi_ref, bphi_ref,
                           wpsi_ref, bpsi_ref, uwT_ref, uhk_ref,
                           wout_ref, scale_ref, shift_ref,
                           o_ref,
                           attn_scr, mat_scr, up_scr, aup_scr):
    f32 = jnp.float32
    x = x_ref[0]                       # (Cin,   nb*HW)   bf16
    xs = xs_ref[0]                     # (4*Cin, nb*HhWh) bf16
    g = g_ref[0]                       # (Cg,    nb*HhWh) bf16

    # out_transform conv hoisted before the gate (diagonal gate commutes with
    # the channel matmul), bf16 operands, f32 accumulation.
    z = jnp.dot(wout_ref[...], x, preferred_element_type=f32)        # (Cin, nb*HW)

    # theta: 2x2 stride-2 conv as one matmul over K = 4*Cin (no bias).
    theta = jnp.dot(wth_ref[...], xs, preferred_element_type=f32)    # (Ci, L)
    # phi: 1x1 conv + bias.
    phi = jnp.dot(wphi_ref[...], g, preferred_element_type=f32) + bphi_ref[...]
    # f = relu(theta + phi)
    f = jnp.maximum(theta + phi, 0.0)                                 # (Ci, L)
    # psi: 1x1 conv to 1 channel on the VPU (broadcast-mul + sublane reduce),
    # then sigmoid -> attention map (1, L).
    psi = jnp.sum(f * wpsi_ref[...], axis=0, keepdims=True) + bpsi_ref[...]
    attn = jax.nn.sigmoid(psi)                                        # (1, L)

    # --- separable bilinear x2 upsample (align_corners=True) ----------------
    # relayout (1, nb*Hh*Wh) -> (nb*Hh, Wh): contiguous row copies via scratch.
    attn_scr[...] = attn
    nbHh, Wh = mat_scr.shape
    for r in range(nbHh):
        mat_scr[pl.ds(r, 1), :] = attn_scr[pl.ds(0, 1), pl.ds(r * Wh, Wh)]
    # Two tiny matmuls (kept f32: the M=1 dense-up-matrix concern no longer
    # applies, and f32 interpolation weights match the PyTorch reference).
    b = jnp.dot(mat_scr[...], uwT_ref[...], preferred_element_type=f32)   # (nb*Hh, W)
    c = jnp.dot(uhk_ref[...], b, preferred_element_type=f32)              # (nb*H,  W)
    # relayout (nb*H, W) -> (1, nb*H*W): contiguous row copies.
    up_scr[...] = c
    nbH, W = up_scr.shape
    for r in range(nbH):
        aup_scr[pl.ds(0, 1), pl.ds(r * W, W)] = up_scr[pl.ds(r, 1), :]

    # Gate the f32 accumulator (broadcast over channels), then folded bias+BN.
    out = z * aup_scr[...] * scale_ref[...] + shift_ref[...]
    o_ref[0] = out.astype(o_ref.dtype)


# -----------------------------------------------------------------------------
# Bilinear interpolation matrix, PyTorch F.interpolate(align_corners=True).
# -----------------------------------------------------------------------------
def _bilinear_matrix_align_corners(out_size, in_size):
    U = np.zeros((out_size, in_size), np.float32)
    if in_size == 1:
        U[:, 0] = 1.0
        return U
    scale = (in_size - 1) / (out_size - 1) if out_size > 1 else 0.0
    for i in range(out_size):
        src = i * scale
        lo = min(int(np.floor(src)), in_size - 2)
        frac = src - lo
        U[i, lo] += 1.0 - frac
        U[i, lo + 1] += frac
    return U


# -----------------------------------------------------------------------------
# Forward wrapper: NCHW in / NCHW out (bf16), one pallas_call for the block.
# num_groups=1: single grid step (right for single-TC v5e/v6e and tiny batch).
# On v7x with batch >= 2, use num_groups=2 so each TensorCore gets one
# lane-dense step (dimension_semantics=("parallel",)).
# -----------------------------------------------------------------------------
def attention_block_forward(x_nchw, g_nchw, params, num_groups=1):
    N, Cin, H, W = x_nchw.shape
    _, Cg, Hh, Wh = g_nchw.shape
    assert H == 2 * Hh and W == 2 * Wh, "expects sub_sample_factor == 2"
    assert N % num_groups == 0
    G = num_groups
    nb = N // G
    HW, HhWh = H * W, Hh * Wh
    Cinter = params["w_theta"].shape[0]
    bf16 = jnp.bfloat16

    # Layout plumbing (cheap XLA ops): pack (n, h, w) onto the lane axis.
    x_flat = (x_nchw.reshape(G, nb, Cin, HW)
              .transpose(0, 2, 1, 3)
              .reshape(G, Cin, nb * HW).astype(bf16))
    x_s2d = (x_nchw.reshape(G, nb, Cin, Hh, 2, Wh, 2)
             .transpose(0, 2, 4, 6, 1, 3, 5)        # (G, Cin, ki, kj, n, Hh, Wh)
             .reshape(G, Cin * 4, nb * HhWh).astype(bf16))
    g_flat = (g_nchw.reshape(G, nb, Cg, HhWh)
              .transpose(0, 2, 1, 3)
              .reshape(G, Cg, nb * HhWh).astype(bf16))

    # Parameters, reshaped / folded for the kernel.
    w_theta = params["w_theta"].reshape(Cinter, Cin * 4).astype(bf16)
    w_phi = params["w_phi"].astype(bf16)
    b_phi = params["b_phi"].reshape(Cinter, 1).astype(jnp.float32)
    w_psi_col = params["w_psi"].reshape(Cinter, 1).astype(jnp.float32)
    b_psi = params["b_psi"].reshape(1, 1).astype(jnp.float32)
    w_out = params["w_out"].astype(bf16)
    scale = params["scale_out"].reshape(Cin, 1).astype(jnp.float32)
    shift = params["shift_out"].reshape(Cin, 1).astype(jnp.float32)

    # Separable bilinear (align_corners=True) operators: tiny, f32.
    U_h = _bilinear_matrix_align_corners(H, Hh)                     # (H, Hh)
    U_w = _bilinear_matrix_align_corners(W, Wh)                     # (W, Wh)
    uwT = jnp.asarray(U_w.T)                                        # (Wh, W)
    uhk = jnp.asarray(np.kron(np.eye(nb, dtype=np.float32), U_h))   # (nb*H, nb*Hh)

    out = pl.pallas_call(
        attention_block_kernel,
        out_shape=jax.ShapeDtypeStruct((G, Cin, nb * HW), jnp.bfloat16),
        grid=(G,),
        in_specs=[
            pl.BlockSpec((1, Cin, nb * HW), lambda i: (i, 0, 0)),
            pl.BlockSpec((1, Cin * 4, nb * HhWh), lambda i: (i, 0, 0)),
            pl.BlockSpec((1, Cg, nb * HhWh), lambda i: (i, 0, 0)),
            pl.BlockSpec((Cinter, Cin * 4), lambda i: (0, 0)),
            pl.BlockSpec((Cinter, Cg), lambda i: (0, 0)),
            pl.BlockSpec((Cinter, 1), lambda i: (0, 0)),
            pl.BlockSpec((Cinter, 1), lambda i: (0, 0)),
            pl.BlockSpec((1, 1), lambda i: (0, 0)),
            pl.BlockSpec((Wh, W), lambda i: (0, 0)),
            pl.BlockSpec((nb * H, nb * Hh), lambda i: (0, 0)),
            pl.BlockSpec((Cin, Cin), lambda i: (0, 0)),
            pl.BlockSpec((Cin, 1), lambda i: (0, 0)),
            pl.BlockSpec((Cin, 1), lambda i: (0, 0)),
        ],
        out_specs=pl.BlockSpec((1, Cin, nb * HW), lambda i: (i, 0, 0)),
        scratch_shapes=[
            pltpu.VMEM((1, nb * HhWh), jnp.float32),
            pltpu.VMEM((nb * Hh, Wh), jnp.float32),
            pltpu.VMEM((nb * H, W), jnp.float32),
            pltpu.VMEM((1, nb * HW), jnp.float32),
        ],
        compiler_params=pltpu.CompilerParams(
            dimension_semantics=("parallel",)),
    )(x_flat, x_s2d, g_flat, w_theta, w_phi, b_phi,
      w_psi_col, b_psi, uwT, uhk, w_out, scale, shift)

    # Unpack lanes (n, h, w) back to NCHW.  Output stays bf16 (review item 6).
    out = (out.reshape(G, Cin, nb, HW)
           .transpose(0, 2, 1, 3)
           .reshape(N, Cin, H, W))
    return out


# -----------------------------------------------------------------------------
# Pure-JAX f32 reference (same math, PyTorch op order) for a sanity check.
# -----------------------------------------------------------------------------
def attention_block_reference(x, g, params):
    N, Cin, H, W = x.shape
    _, Cg, Hh, Wh = g.shape
    Cinter = params["w_theta"].shape[0]
    xs = x.reshape(N, Cin, Hh, 2, Wh, 2)
    theta = jnp.einsum('ockl,nchkwl->nohw', params["w_theta"], xs)
    phi = (jnp.einsum('oc,nchw->nohw', params["w_phi"], g)
           + params["b_phi"][None, :, None, None])
    f = jnp.maximum(theta + phi, 0.0)
    psi = (jnp.einsum('oc,nchw->nohw', params["w_psi"], f)
           + params["b_psi"][None, :, None, None])
    attn = jax.nn.sigmoid(psi)                                     # (N,1,Hh,Wh)
    Uh = jnp.asarray(_bilinear_matrix_align_corners(H, Hh))
    Uw = jnp.asarray(_bilinear_matrix_align_corners(W, Wh))
    attn_up = jnp.einsum('Hh,nchw,Ww->ncHW', Uh, attn, Uw)
    y = attn_up * x
    out = jnp.einsum('oc,nchw->nohw', params["w_out"], y)
    out = (out * params["scale_out"][None, :, None, None]
           + params["shift_out"][None, :, None, None])
    return out


# -----------------------------------------------------------------------------
# Deterministic synthetic parameters (BatchNorm folded in eval mode).
# -----------------------------------------------------------------------------
def make_attention_block_params(key, in_channels, gating_channels,
                                inter_channels, sub_sample_factor=2, eps=1e-5):
    ks = jax.random.split(key, 7)
    f32 = jnp.float32
    s = sub_sample_factor
    w_theta = 0.1 * jax.random.normal(ks[0], (inter_channels, in_channels, s, s), f32)
    w_phi = 0.1 * jax.random.normal(ks[1], (inter_channels, gating_channels), f32)
    b_phi = 0.1 * jax.random.normal(ks[2], (inter_channels,), f32)
    w_psi = 0.1 * jax.random.normal(ks[3], (1, inter_channels), f32)
    b_psi = 0.1 * jax.random.normal(ks[4], (1,), f32)
    w_out = 0.1 * jax.random.normal(ks[5], (in_channels, in_channels), f32)
    b_out = 0.1 * jax.random.normal(ks[6], (in_channels,), f32)
    gamma = jnp.ones((in_channels,), f32)
    beta = jnp.zeros((in_channels,), f32)
    mean = jnp.zeros((in_channels,), f32)
    var = jnp.ones((in_channels,), f32)
    scale_out = gamma / jnp.sqrt(var + eps)
    shift_out = (b_out - mean) * scale_out + beta
    return {"w_theta": w_theta, "w_phi": w_phi, "b_phi": b_phi,
            "w_psi": w_psi, "b_psi": b_psi,
            "w_out": w_out, "scale_out": scale_out, "shift_out": shift_out}


if __name__ == "__main__":
    key = jax.random.PRNGKey(0)
    kx, kg, kp = jax.random.split(key, 3)

    # Small shapes consistent with the module: x full-res, g at half resolution.
    N, Cin, H, W = 2, 8, 16, 16
    Cg, Cinter = 8, 8
    x = jax.random.normal(kx, (N, Cin, H, W), jnp.float32)
    g = jax.random.normal(kg, (N, Cg, H // 2, W // 2), jnp.float32)

    params = make_attention_block_params(kp, Cin, Cg, Cinter, sub_sample_factor=2)

    fwd = jax.jit(attention_block_forward)
    out = fwd(x, g, params)
    jax.block_until_ready(out)

    assert out.shape == (N, Cin, H, W)
    assert bool(jnp.all(jnp.isfinite(out)))

    # Loose sanity check against the f32 reference (kernel runs bf16 on MXU).
    ref = attention_block_reference(x, g, params)
    max_err = float(jnp.max(jnp.abs(out.astype(jnp.float32) - ref)))
    assert max_err < 0.1, f"max abs err {max_err}"

    print("KERNEL_OK")
</pallas_src>

<mosaic_0001>
module attributes {stable_mosaic.version = 11 : i64} {
  func.func @attention_block_kernel(%arg0: i32, %arg1: memref<1x8x512xbf16, #tpu.memory_space<vmem>>, %arg2: memref<1x32x128xbf16, #tpu.memory_space<vmem>>, %arg3: memref<1x8x128xbf16, #tpu.memory_space<vmem>>, %arg4: memref<8x32xbf16, #tpu.memory_space<vmem>>, %arg5: memref<8x8xbf16, #tpu.memory_space<vmem>>, %arg6: memref<8x1xf32, #tpu.memory_space<vmem>>, %arg7: memref<8x1xf32, #tpu.memory_space<vmem>>, %arg8: memref<1x1xf32, #tpu.memory_space<vmem>>, %arg9: memref<8x16xf32, #tpu.memory_space<vmem>>, %arg10: memref<32x16xf32, #tpu.memory_space<vmem>>, %arg11: memref<8x8xbf16, #tpu.memory_space<vmem>>, %arg12: memref<8x1xf32, #tpu.memory_space<vmem>>, %arg13: memref<8x1xf32, #tpu.memory_space<vmem>>, %arg14: memref<1x8x512xbf16, #tpu.memory_space<vmem>>, %arg15: memref<1x128xf32, #tpu.memory_space<vmem>>, %arg16: memref<16x8xf32, #tpu.memory_space<vmem>>, %arg17: memref<32x16xf32, #tpu.memory_space<vmem>>, %arg18: memref<1x512xf32, #tpu.memory_space<vmem>>) attributes {dimension_semantics = [#tpu.dimension_semantics<parallel>], iteration_bounds = array<i64: 1>, scalar_prefetch = 0 : i64, scratch_operands = 4 : i64, tpu.core_type = #tpu.core_type<tc>, window_params = [{transform_indices = @transform_0, window_bounds = array<i64: 1, 8, 512>}, {transform_indices = @transform_1, window_bounds = array<i64: 1, 32, 128>}, {transform_indices = @transform_2, window_bounds = array<i64: 1, 8, 128>}, {pipeline_mode = #tpu.pipeline_mode<synchronous>, transform_indices = @transform_3, window_bounds = array<i64: 8, 32>}, {pipeline_mode = #tpu.pipeline_mode<synchronous>, transform_indices = @transform_4, window_bounds = array<i64: 8, 8>}, {pipeline_mode = #tpu.pipeline_mode<synchronous>, transform_indices = @transform_5, window_bounds = array<i64: 8, 1>}, {pipeline_mode = #tpu.pipeline_mode<synchronous>, transform_indices = @transform_6, window_bounds = array<i64: 8, 1>}, {pipeline_mode = #tpu.pipeline_mode<synchronous>, transform_indices = @transform_7, window_bounds = array<i64: 1, 1>}, {pipeline_mode = #tpu.pipeline_mode<synchronous>, transform_indices = @transform_8, window_bounds = array<i64: 8, 16>}, {pipeline_mode = #tpu.pipeline_mode<synchronous>, transform_indices = @transform_9, window_bounds = array<i64: 32, 16>}, {pipeline_mode = #tpu.pipeline_mode<synchronous>, transform_indices = @transform_10, window_bounds = array<i64: 8, 8>}, {pipeline_mode = #tpu.pipeline_mode<synchronous>, transform_indices = @transform_11, window_bounds = array<i64: 8, 1>}, {pipeline_mode = #tpu.pipeline_mode<synchronous>, transform_indices = @transform_12, window_bounds = array<i64: 8, 1>}, {transform_indices = @transform_13, window_bounds = array<i64: 1, 8, 512>}]} {
    %c0 = arith.constant 0 : index
    %c0_0 = arith.constant 0 : index
    %c0_1 = arith.constant 0 : index
    %0 = vector.load %arg1[%c0, %c0_0, %c0_1] : memref<1x8x512xbf16, #tpu.memory_space<vmem>>, vector<1x8x512xbf16>
    %1 = vector.shape_cast %0 : vector<1x8x512xbf16> to vector<8x512xbf16>
    %c0_2 = arith.constant 0 : index
    %c0_3 = arith.constant 0 : index
    %c0_4 = arith.constant 0 : index
    %2 = vector.load %arg2[%c0_2, %c0_3, %c0_4] : memref<1x32x128xbf16, #tpu.memory_space<vmem>>, vector<1x32x128xbf16>
    %3 = vector.shape_cast %2 : vector<1x32x128xbf16> to vector<32x128xbf16>
    %c0_5 = arith.constant 0 : index
    %c0_6 = arith.constant 0 : index
    %c0_7 = arith.constant 0 : index
    %4 = vector.load %arg3[%c0_5, %c0_6, %c0_7] : memref<1x8x128xbf16, #tpu.memory_space<vmem>>, vector<1x8x128xbf16>
    %5 = vector.shape_cast %4 : vector<1x8x128xbf16> to vector<8x128xbf16>
    %c0_8 = arith.constant 0 : index
    %c0_9 = arith.constant 0 : index
    %6 = vector.load %arg11[%c0_8, %c0_9] : memref<8x8xbf16, #tpu.memory_space<vmem>>, vector<8x8xbf16>
    %cst = arith.constant dense<0.000000e+00> : vector<8x512xf32>
    %7 = tpu.matmul %6, %1, %cst {dimension_numbers = #tpu.dot_dimension_numbers<[1], [0], [0], [1], [0, 0, 1, 1], [], []>} : vector<8x8xbf16>, vector<8x512xbf16>, vector<8x512xf32> -> vector<8x512xf32>
    %c0_10 = arith.constant 0 : index
    %c0_11 = arith.constant 0 : index
    %8 = vector.load %arg4[%c0_10, %c0_11] : memref<8x32xbf16, #tpu.memory_space<vmem>>, vector<8x32xbf16>
    %cst_12 = arith.constant dense<0.000000e+00> : vector<8x128xf32>
    %9 = tpu.matmul %8, %3, %cst_12 {dimension_numbers = #tpu.dot_dimension_numbers<[1], [0], [0], [1], [0, 0, 1, 1], [], []>} : vector<8x32xbf16>, vector<32x128xbf16>, vector<8x128xf32> -> vector<8x128xf32>
    %c0_13 = arith.constant 0 : index
    %c0_14 = arith.constant 0 : index
    %10 = vector.load %arg5[%c0_13, %c0_14] : memref<8x8xbf16, #tpu.memory_space<vmem>>, vector<8x8xbf16>
    %cst_15 = arith.constant dense<0.000000e+00> : vector<8x128xf32>
    %11 = tpu.matmul %10, %5, %cst_15 {dimension_numbers = #tpu.dot_dimension_numbers<[1], [0], [0], [1], [0, 0, 1, 1], [], []>} : vector<8x8xbf16>, vector<8x128xbf16>, vector<8x128xf32> -> vector<8x128xf32>
    %c0_16 = arith.constant 0 : index
    %c0_17 = arith.constant 0 : index
    %12 = vector.load %arg6[%c0_16, %c0_17] : memref<8x1xf32, #tpu.memory_space<vmem>>, vector<8x1xf32>
    %13 = vector.broadcast %12 : vector<8x1xf32> to vector<8x128xf32>
    %14 = arith.addf %11, %13 : vector<8x128xf32>
    %15 = arith.addf %9, %14 : vector<8x128xf32>
    %cst_18 = arith.constant 0.000000e+00 : f32
    %16 = vector.broadcast %cst_18 : f32 to vector<8x128xf32>
    %17 = arith.maximumf %15, %16 : vector<8x128xf32>
    %c0_19 = arith.constant 0 : index
    %c0_20 = arith.constant 0 : index
    %18 = vector.load %arg7[%c0_19, %c0_20] : memref<8x1xf32, #tpu.memory_space<vmem>>, vector<8x1xf32>
    %19 = vector.broadcast %18 : vector<8x1xf32> to vector<8x128xf32>
    %20 = arith.mulf %17, %19 : vector<8x128xf32>
    %cst_21 = arith.constant dense<0.000000e+00> : vector<128xf32>
    %21 = vector.multi_reduction <add>, %20, %cst_21 [0] : vector<8x128xf32> to vector<128xf32>
    %22 = vector.shape_cast %21 : vector<128xf32> to vector<1x128xf32>
    %c0_22 = arith.constant 0 : index
    %c0_23 = arith.constant 0 : index
    %23 = vector.load %arg8[%c0_22, %c0_23] : memref<1x1xf32, #tpu.memory_space<vmem>>, vector<1x1xf32>
    %24 = vector.broadcast %23 : vector<1x1xf32> to vector<1x128xf32>
    %25 = arith.addf %22, %24 : vector<1x128xf32>
    %26 = arith.negf %25 : vector<1x128xf32>
    %27 = math.exp %26 : vector<1x128xf32>
    %cst_24 = arith.constant 1.000000e+00 : f32
    %28 = vector.broadcast %cst_24 : f32 to vector<1x128xf32>
    %29 = arith.addf %28, %27 : vector<1x128xf32>
    %30 = arith.divf %28, %29 : vector<1x128xf32>
    %c0_25 = arith.constant 0 : index
    %c0_26 = arith.constant 0 : index
    %31 = vector.load %arg15[%c0_25, %c0_26] : memref<1x128xf32, #tpu.memory_space<vmem>>, vector<1x128xf32>
    tpu.vector_store %arg15[%c0_25, %c0_26], %30 {strides = array<i32>} : memref<1x128xf32, #tpu.memory_space<vmem>>, vector<1x128xf32>,
    %c0_27 = arith.constant 0 : index
    %c0_28 = arith.constant 0 : index
    %32 = vector.load %arg15[%c0_27, %c0_28] : memref<1x128xf32, #tpu.memory_space<vmem>>, vector<1x8xf32>
    %c0_29 = arith.constant 0 : index
    %c0_30 = arith.constant 0 : index
    %33 = vector.load %arg16[%c0_29, %c0_30] : memref<16x8xf32, #tpu.memory_space<vmem>>, vector<1x8xf32>
    tpu.vector_store %arg16[%c0_29, %c0_30], %32 {strides = array<i32>} : memref<16x8xf32, #tpu.memory_space<vmem>>, vector<1x8xf32>,
    %c0_31 = arith.constant 0 : index
    %c8 = arith.constant 8 : index
    %34 = vector.load %arg15[%c0_31, %c8] : memref<1x128xf32, #tpu.memory_space<vmem>>, vector<1x8xf32>
    %c1 = arith.constant 1 : index
    %c0_32 = arith.constant 0 : index
    %35 = vector.load %arg16[%c1, %c0_32] : memref<16x8xf32, #tpu.memory_space<vmem>>, vector<1x8xf32>
    tpu.vector_store %arg16[%c1, %c0_32], %34 {strides = array<i32>} : memref<16x8xf32, #tpu.memory_space<vmem>>, vector<1x8xf32>,
    %c0_33 = arith.constant 0 : index
    %c16 = arith.constant 16 : index
    %36 = vector.load %arg15[%c0_33, %c16] : memref<1x128xf32, #tpu.memory_space<vmem>>, vector<1x8xf32>
    %c2 = arith.constant 2 : index
    %c0_34 = arith.constant 0 : index
    %37 = vector.load %arg16[%c2, %c0_34] : memref<16x8xf32, #tpu.memory_space<vmem>>, vector<1x8xf32>
    tpu.vector_store %arg16[%c2, %c0_34], %36 {strides = array<i32>} : memref<16x8xf32, #tpu.memory_space<vmem>>, vector<1x8xf32>,
    %c0_35 = arith.constant 0 : index
    %c24 = arith.constant 24 : index
    %38 = vector.load %arg15[%c0_35, %c24] : memref<1x128xf32, #tpu.memory_space<vmem>>, vector<1x8xf32>
    %c3 = arith.constant 3 : index
    %c0_36 = arith.constant 0 : index
    %39 = vector.load %arg16[%c3, %c0_36] : memref<16x8xf32, #tpu.memory_space<vmem>>, vector<1x8xf32>
    tpu.vector_store %arg16[%c3, %c0_36], %38 {strides = array<i32>} : memref<16x8xf32, #tpu.memory_space<vmem>>, vector<1x8xf32>,
    %c0_37 = arith.constant 0 : index
    %c32 = arith.constant 32 : index
    %40 = vector.load %arg15[%c0_37, %c32] : memref<1x128xf32, #tpu.memory_space<vmem>>, vector<1x8xf32>
    %c4 = arith.constant 4 : index
    %c0_38 = arith.constant 0 : index
    %41 = vector.load %arg16[%c4, %c0_38] : memref<16x8xf32, #tpu.memory_space<vmem>>, vector<1x8xf32>
    tpu.vector_store %arg16[%c4, %c0_38], %40 {strides = array<i32>} : memref<16x8xf32, #tpu.memory_space<vmem>>, vector<1x8xf32>,
    %c0_39 = arith.constant 0 : index
    %c40 = arith.constant 40 : index
    %42 = vector.load %arg15[%c0_39, %c40] : memref<1x128xf32, #tpu.memory_space<vmem>>, vector<1x8xf32>
    %c5 = arith.constant 5 : index
    %c0_40 = arith.constant 0 : index
    %43 = vector.load %arg16[%c5, %c0_40] : memref<16x8xf32, #tpu.memory_space<vmem>>, vector<1x8xf32>
    tpu.vector_store %arg16[%c5, %c0_40], %42 {strides = array<i32>} : memref<16x8xf32, #tpu.memory_space<vmem>>, vector<1x8xf32>,
    %c0_41 = arith.constant 0 : index
    %c48 = arith.constant 48 : index
    %44 = vector.load %arg15[%c0_41, %c48] : memref<1x128xf32, #tpu.memory_space<vmem>>, vector<1x8xf32>
    %c6 = arith.constant 6 : index
    %c0_42 = arith.constant 0 : index
    %45 = vector.load %arg16[%c6, %c0_42] : memref<16x8xf32, #tpu.memory_space<vmem>>, vector<1x8xf32>
    tpu.vector_store %arg16[%c6, %c0_42], %44 {strides = array<i32>} : memref<16x8xf32, #tpu.memory_space<vmem>>, vector<1x8xf32>,
    %c0_43 = arith.constant 0 : index
    %c56 = arith.constant 56 : index
    %46 = vector.load %arg15[%c0_43, %c56] : memref<1x128xf32, #tpu.memory_space<vmem>>, vector<1x8xf32>
    %c7 = arith.constant 7 : index
    %c0_44 = arith.constant 0 : index
    %47 = vector.load %arg16[%c7, %c0_44] : memref<16x8xf32, #tpu.memory_space<vmem>>, vector<1x8xf32>
    tpu.vector_store %arg16[%c7, %c0_44], %46 {strides = array<i32>} : memref<16x8xf32, #tpu.memory_space<vmem>>, vector<1x8xf32>,
    %c0_45 = arith.constant 0 : index
    %c64 = arith.constant 64 : index
    %48 = vector.load %arg15[%c0_45, %c64] : memref<1x128xf32, #tpu.memory_space<vmem>>, vector<1x8xf32>
    %c8_46 = arith.constant 8 : index
    %c0_47 = arith.constant 0 : index
    %49 = vector.load %arg16[%c8_46, %c0_47] : memref<16x8xf32, #tpu.memory_space<vmem>>, vector<1x8xf32>
    tpu.vector_store %arg16[%c8_46, %c0_47], %48 {strides = array<i32>} : memref<16x8xf32, #tpu.memory_space<vmem>>, vector<1x8xf32>,
    %c0_48 = arith.constant 0 : index
    %c72 = arith.constant 72 : index
    %50 = vector.load %arg15[%c0_48, %c72] : memref<1x128xf32, #tpu.memory_space<vmem>>, vector<1x8xf32>
    %c9 = arith.constant 9 : index
    %c0_49 = arith.constant 0 : index
    %51 = vector.load %arg16[%c9, %c0_49] : memref<16x8xf32, #tpu.memory_space<vmem>>, vector<1x8xf32>
    tpu.vector_store %arg16[%c9, %c0_49], %50 {strides = array<i32>} : memref<16x8xf32, #tpu.memory_space<vmem>>, vector<1x8xf32>,
    %c0_50 = arith.constant 0 : index
    %c80 = arith.constant 80 : index
    %52 = vector.load %arg15[%c0_50, %c80] : memref<1x128xf32, #tpu.memory_space<vmem>>, vector<1x8xf32>
    %c10 = arith.constant 10 : index
    %c0_51 = arith.constant 0 : index
    %53 = vector.load %arg16[%c10, %c0_51] : memref<16x8xf32, #tpu.memory_space<vmem>>, vector<1x8xf32>
    tpu.vector_store %arg16[%c10, %c0_51], %52 {strides = array<i32>} : memref<16x8xf32, #tpu.memory_space<vmem>>, vector<1x8xf32>,
    %c0_52 = arith.constant 0 : index
    %c88 = arith.constant 88 : index
    %54 = vector.load %arg15[%c0_52, %c88] : memref<1x128xf32, #tpu.memory_space<vmem>>, vector<1x8xf32>
    %c11 = arith.constant 11 : index
    %c0_53 = arith.constant 0 : index
    %55 = vector.load %arg16[%c11, %c0_53] : memref<16x8xf32, #tpu.memory_space<vmem>>, vector<1x8xf32>
    tpu.vector_store %arg16[%c11, %c0_53], %54 {strides = array<i32>} : memref<16x8xf32, #tpu.memory_space<vmem>>, vector<1x8xf32>,
    %c0_54 = arith.constant 0 : index
    %c96 = arith.constant 96 : index
    %56 = vector.load %arg15[%c0_54, %c96] : memref<1x128xf32, #tpu.memory_space<vmem>>, vector<1x8xf32>
    %c12 = arith.constant 12 : index
    %c0_55 = arith.constant 0 : index
    %57 = vector.load %arg16[%c12, %c0_55] : memref<16x8xf32, #tpu.memory_space<vmem>>, vector<1x8xf32>
    tpu.vector_store %arg16[%c12, %c0_55], %56 {strides = array<i32>} : memref<16x8xf32, #tpu.memory_space<vmem>>, vector<1x8xf32>,
    %c0_56 = arith.constant 0 : index
    %c104 = arith.constant 104 : index
    %58 = vector.load %arg15[%c0_56, %c104] : memref<1x128xf32, #tpu.memory_space<vmem>>, vector<1x8xf32>
    %c13 = arith.constant 13 : index
    %c0_57 = arith.constant 0 : index
    %59 = vector.load %arg16[%c13, %c0_57] : memref<16x8xf32, #tpu.memory_space<vmem>>, vector<1x8xf32>
    tpu.vector_store %arg16[%c13, %c0_57], %58 {strides = array<i32>} : memref<16x8xf32, #tpu.memory_space<vmem>>, vector<1x8xf32>,
    %c0_58 = arith.constant 0 : index
    %c112 = arith.constant 112 : index
    %60 = vector.load %arg15[%c0_58, %c112] : memref<1x128xf32, #tpu.memory_space<vmem>>, vector<1x8xf32>
    %c14 = arith.constant 14 : index
    %c0_59 = arith.constant 0 : index
    %61 = vector.load %arg16[%c14, %c0_59] : memref<16x8xf32, #tpu.memory_space<vmem>>, vector<1x8xf32>
    tpu.vector_store %arg16[%c14, %c0_59], %60 {strides = array<i32>} : memref<16x8xf32, #tpu.memory_space<vmem>>, vector<1x8xf32>,
    %c0_60 = arith.constant 0 : index
    %c120 = arith.constant 120 : index
    %62 = vector.load %arg15[%c0_60, %c120] : memref<1x128xf32, #tpu.memory_space<vmem>>, vector<1x8xf32>
    %c15 = arith.constant 15 : index
    %c0_61 = arith.constant 0 : index
    %63 = vector.load %arg16[%c15, %c0_61] : memref<16x8xf32, #tpu.memory_space<vmem>>, vector<1x8xf32>
    tpu.vector_store %arg16[%c15, %c0_61], %62 {strides = array<i32>} : memref<16x8xf32, #tpu.memory_space<vmem>>, vector<1x8xf32>,
    %c0_62 = arith.constant 0 : index
    %c0_63 = arith.constant 0 : index
    %64 = vector.load %arg16[%c0_62, %c0_63] : memref<16x8xf32, #tpu.memory_space<vmem>>, vector<16x8xf32>
    %c0_64 = arith.constant 0 : index
    %c0_65 = arith.constant 0 : index
    %65 = vector.load %arg9[%c0_64, %c0_65] : memref<8x16xf32, #tpu.memory_space<vmem>>, vector<8x16xf32>
    %cst_66 = arith.constant dense<0.000000e+00> : vector<16x16xf32>
    %66 = tpu.matmul %64, %65, %cst_66 {dimension_numbers = #tpu.dot_dimension_numbers<[1], [0], [0], [1], [0, 0, 1, 1], [], []>} : vector<16x8xf32>, vector<8x16xf32>, vector<16x16xf32> -> vector<16x16xf32>
    %c0_67 = arith.constant 0 : index
    %c0_68 = arith.constant 0 : index
    %67 = vector.load %arg10[%c0_67, %c0_68] : memref<32x16xf32, #tpu.memory_space<vmem>>, vector<32x16xf32>
    %cst_69 = arith.constant dense<0.000000e+00> : vector<32x16xf32>
    %68 = tpu.matmul %67, %66, %cst_69 {dimension_numbers = #tpu.dot_dimension_numbers<[1], [0], [0], [1], [0, 0, 1, 1], [], []>} : vector<32x16xf32>, vector<16x16xf32>, vector<32x16xf32> -> vector<32x16xf32>
    %c0_70 = arith.constant 0 : index
    %c0_71 = arith.constant 0 : index
    %69 = vector.load %arg17[%c0_70, %c0_71] : memref<32x16xf32, #tpu.memory_space<vmem>>, vector<32x16xf32>
    tpu.vector_store %arg17[%c0_70, %c0_71], %68 {strides = array<i32>} : memref<32x16xf32, #tpu.memory_space<vmem>>, vector<32x16xf32>,
    %c0_72 = arith.constant 0 : index
    %c0_73 = arith.constant 0 : index
    %70 = vector.load %arg17[%c0_72, %c0_73] : memref<32x16xf32, #tpu.memory_space<vmem>>, vector<1x16xf32>
    %c0_74 = arith.constant 0 : index
    %c0_75 = arith.constant 0 : index
    %71 = vector.load %arg18[%c0_74, %c0_75] : memref<1x512xf32, #tpu.memory_space<vmem>>, vector<1x16xf32>
    tpu.vector_store %arg18[%c0_74, %c0_75], %70 {strides = array<i32>} : memref<1x512xf32, #tpu.memory_space<vmem>>, vector<1x16xf32>,
    %c1_76 = arith.constant 1 : index
    %c0_77 = arith.constant 0 : index
    %72 = vector.load %arg17[%c1_76, %c0_77] : memref<32x16xf32, #tpu.memory_space<vmem>>, vector<1x16xf32>
    %c0_78 = arith.constant 0 : index
    %c16_79 = arith.constant 16 : index
    %73 = vector.load %arg18[%c0_78, %c16_79] : memref<1x512xf32, #tpu.memory_space<vmem>>, vector<1x16xf32>
    tpu.vector_store %arg18[%c0_78, %c16_79], %72 {strides = array<i32>} : memref<1x512xf32, #tpu.memory_space<vmem>>, vector<1x16xf32>,
    %c2_80 = arith.constant 2 : index
    %c0_81 = arith.constant 0 : index
    %74 = vector.load %arg17[%c2_80, %c0_81] : memref<32x16xf32, #tpu.memory_space<vmem>>, vector<1x16xf32>
    %c0_82 = arith.constant 0 : index
    %c32_83 = arith.constant 32 : index
    %75 = vector.load %arg18[%c0_82, %c32_83] : memref<1x512xf32, #tpu.memory_space<vmem>>, vector<1x16xf32>
    tpu.vector_store %arg18[%c0_82, %c32_83], %74 {strides = array<i32>} : memref<1x512xf32, #tpu.memory_space<vmem>>, vector<1x16xf32>,
    %c3_84 = arith.constant 3 : index
    %c0_85 = arith.constant 0 : index
    %76 = vector.load %arg17[%c3_84, %c0_85] : memref<32x16xf32, #tpu.memory_space<vmem>>, vector<1x16xf32>
    %c0_86 = arith.constant 0 : index
    %c48_87 = arith.constant 48 : index
    %77 = vector.load %arg18[%c0_86, %c48_87] : memref<1x512xf32, #tpu.memory_space<vmem>>, vector<1x16xf32>
    tpu.vector_store %arg18[%c0_86, %c48_87], %76 {strides = array<i32>} : memref<1x512xf32, #tpu.memory_space<vmem>>, vector<1x16xf32>,
    %c4_88 = arith.constant 4 : index
    %c0_89 = arith.constant 0 : index
    %78 = vector.load %arg17[%c4_88, %c0_89] : memref<32x16xf32, #tpu.memory_space<vmem>>, vector<1x16xf32>
    %c0_90 = arith.constant 0 : index
    %c64_91 = arith.constant 64 : index
    %79 = vector.load %arg18[%c0_90, %c64_91] : memref<1x512xf32, #tpu.memory_space<vmem>>, vector<1x16xf32>
    tpu.vector_store %arg18[%c0_90, %c64_91], %78 {strides = array<i32>} : memref<1x512xf32, #tpu.memory_space<vmem>>, vector<1x16xf32>,
    %c5_92 = arith.constant 5 : index
    %c0_93 = arith.constant 0 : index
    %80 = vector.load %arg17[%c5_92, %c0_93] : memref<32x16xf32, #tpu.memory_space<vmem>>, vector<1x16xf32>
    %c0_94 = arith.constant 0 : index
    %c80_95 = arith.constant 80 : index
    %81 = vector.load %arg18[%c0_94, %c80_95] : memref<1x512xf32, #tpu.memory_space<vmem>>, vector<1x16xf32>
    tpu.vector_store %arg18[%c0_94, %c80_95], %80 {strides = array<i32>} : memref<1x512xf32, #tpu.memory_space<vmem>>, vector<1x16xf32>,
    %c6_96 = arith.constant 6 : index
    %c0_97 = arith.constant 0 : index
    %82 = vector.load %arg17[%c6_96, %c0_97] : memref<32x16xf32, #tpu.memory_space<vmem>>, vector<1x16xf32>
    %c0_98 = arith.constant 0 : index
    %c96_99 = arith.constant 96 : index
    %83 = vector.load %arg18[%c0_98, %c96_99] : memref<1x512xf32, #tpu.memory_space<vmem>>, vector<1x16xf32>
    tpu.vector_store %arg18[%c0_98, %c96_99], %82 {strides = array<i32>} : memref<1x512xf32, #tpu.memory_space<vmem>>, vector<1x16xf32>,
    %c7_100 = arith.constant 7 : index
    %c0_101 = arith.constant 0 : index
    %84 = vector.load %arg17[%c7_100, %c0_101] : memref<32x16xf32, #tpu.memory_space<vmem>>, vector<1x16xf32>
    %c0_102 = arith.constant 0 : index
    %c112_103 = arith.constant 112 : index
    %85 = vector.load %arg18[%c0_102, %c112_103] : memref<1x512xf32, #tpu.memory_space<vmem>>, vector<1x16xf32>
    tpu.vector_store %arg18[%c0_102, %c112_103], %84 {strides = array<i32>} : memref<1x512xf32, #tpu.memory_space<vmem>>, vector<1x16xf32>,
    %c8_104 = arith.constant 8 : index
    %c0_105 = arith.constant 0 : index
    %86 = vector.load %arg17[%c8_104, %c0_105] : memref<32x16xf32, #tpu.memory_space<vmem>>, vector<1x16xf32>
    %c0_106 = arith.constant 0 : index
    %c128 = arith.constant 128 : index
    %87 = vector.load %arg18[%c0_106, %c128] : memref<1x512xf32, #tpu.memory_space<vmem>>, vector<1x16xf32>
    tpu.vector_store %arg18[%c0_106, %c128], %86 {strides = array<i32>} : memref<1x512xf32, #tpu.memory_space<vmem>>, vector<1x16xf32>,
    %c9_107 = arith.constant 9 : index
    %c0_108 = arith.constant 0 : index
    %88 = vector.load %arg17[%c9_107, %c0_108] : memref<32x16xf32, #tpu.memory_space<vmem>>, vector<1x16xf32>
    %c0_109 = arith.constant 0 : index
    %c144 = arith.constant 144 : index
    %89 = vector.load %arg18[%c0_109, %c144] : memref<1x512xf32, #tpu.memory_space<vmem>>, vector<1x16xf32>
    tpu.vector_store %arg18[%c0_109, %c144], %88 {strides = array<i32>} : memref<1x512xf32, #tpu.memory_space<vmem>>, vector<1x16xf32>,
    %c10_110 = arith.constant 10 : index
    %c0_111 = arith.constant 0 : index
    %90 = vector.load %arg17[%c10_110, %c0_111] : memref<32x16xf32, #tpu.memory_space<vmem>>, vector<1x16xf32>
    %c0_112 = arith.constant 0 : index
    %c160 = arith.constant 160 : index
    %91 = vector.load %arg18[%c0_112, %c160] : memref<1x512xf32, #tpu.memory_space<vmem>>, vector<1x16xf32>
    tpu.vector_store %arg18[%c0_112, %c160], %90 {strides = array<i32>} : memref<1x512xf32, #tpu.memory_space<vmem>>, vector<1x16xf32>,
    %c11_113 = arith.constant 11 : index
    %c0_114 = arith.constant 0 : index
    %92 = vector.load %arg17[%c11_113, %c0_114] : memref<32x16xf32, #tpu.memory_space<vmem>>, vector<1x16xf32>
    %c0_115 = arith.constant 0 : index
    %c176 = arith.constant 176 : index
    %93 = vector.load %arg18[%c0_115, %c176] : memref<1x512xf32, #tpu.memory_space<vmem>>, vector<1x16xf32>
    tpu.vector_store %arg18[%c0_115, %c176], %92 {strides = array<i32>} : memref<1x512xf32, #tpu.memory_space<vmem>>, vector<1x16xf32>,
    %c12_116 = arith.constant 12 : index
    %c0_117 = arith.constant 0 : index
    %94 = vector.load %arg17[%c12_116, %c0_117] : memref<32x16xf32, #tpu.memory_space<vmem>>, vector<1x16xf32>
    %c0_118 = arith.constant 0 : index
    %c192 = arith.constant 192 : index
    %95 = vector.load %arg18[%c0_118, %c192] : memref<1x512xf32, #tpu.memory_space<vmem>>, vector<1x16xf32>
    tpu.vector_store %arg18[%c0_118, %c192], %94 {strides = array<i32>} : memref<1x512xf32, #tpu.memory_space<vmem>>, vector<1x16xf32>,
    %c13_119 = arith.constant 13 : index
    %c0_120 = arith.constant 0 : index
    %96 = vector.load %arg17[%c13_119, %c0_120] : memref<32x16xf32, #tpu.memory_space<vmem>>, vector<1x16xf32>
    %c0_121 = arith.constant 0 : index
    %c208 = arith.constant 208 : index
    %97 = vector.load %arg18[%c0_121, %c208] : memref<1x512xf32, #tpu.memory_space<vmem>>, vector<1x16xf32>
    tpu.vector_store %arg18[%c0_121, %c208], %96 {strides = array<i32>} : memref<1x512xf32, #tpu.memory_space<vmem>>, vector<1x16xf32>,
    %c14_122 = arith.constant 14 : index
    %c0_123 = arith.constant 0 : index
    %98 = vector.load %arg17[%c14_122, %c0_123] : memref<32x16xf32, #tpu.memory_space<vmem>>, vector<1x16xf32>
    %c0_124 = arith.constant 0 : index
    %c224 = arith.constant 224 : index
    %99 = vector.load %arg18[%c0_124, %c224] : memref<1x512xf32, #tpu.memory_space<vmem>>, vector<1x16xf32>
    tpu.vector_store %arg18[%c0_124, %c224], %98 {strides = array<i32>} : memref<1x512xf32, #tpu.memory_space<vmem>>, vector<1x16xf32>,
    %c15_125 = arith.constant 15 : index
    %c0_126 = arith.constant 0 : index
    %100 = vector.load %arg17[%c15_125, %c0_126] : memref<32x16xf32, #tpu.memory_space<vmem>>, vector<1x16xf32>
    %c0_127 = arith.constant 0 : index
    %c240 = arith.constant 240 : index
    %101 = vector.load %arg18[%c0_127, %c240] : memref<1x512xf32, #tpu.memory_space<vmem>>, vector<1x16xf32>
    tpu.vector_store %arg18[%c0_127, %c240], %100 {strides = array<i32>} : memref<1x512xf32, #tpu.memory_space<vmem>>, vector<1x16xf32>,
    %c16_128 = arith.constant 16 : index
    %c0_129 = arith.constant 0 : index
    %102 = vector.load %arg17[%c16_128, %c0_129] : memref<32x16xf32, #tpu.memory_space<vmem>>, vector<1x16xf32>
    %c0_130 = arith.constant 0 : index
    %c256 = arith.constant 256 : index
    %103 = vector.load %arg18[%c0_130, %c256] : memref<1x512xf32, #tpu.memory_space<vmem>>, vector<1x16xf32>
    tpu.vector_store %arg18[%c0_130, %c256], %102 {strides = array<i32>} : memref<1x512xf32, #tpu.memory_space<vmem>>, vector<1x16xf32>,
    %c17 = arith.constant 17 : index
    %c0_131 = arith.constant 0 : index
    %104 = vector.load %arg17[%c17, %c0_131] : memref<32x16xf32, #tpu.memory_space<vmem>>, vector<1x16xf32>
    %c0_132 = arith.constant 0 : index
    %c272 = arith.constant 272 : index
    %105 = vector.load %arg18[%c0_132, %c272] : memref<1x512xf32, #tpu.memory_space<vmem>>, vector<1x16xf32>
    tpu.vector_store %arg18[%c0_132, %c272], %104 {strides = array<i32>} : memref<1x512xf32, #tpu.memory_space<vmem>>, vector<1x16xf32>,
    %c18 = arith.constant 18 : index
    %c0_133 = arith.constant 0 : index
    %106 = vector.load %arg17[%c18, %c0_133] : memref<32x16xf32, #tpu.memory_space<vmem>>, vector<1x16xf32>
    %c0_134 = arith.constant 0 : index
    %c288 = arith.constant 288 : index
    %107 = vector.load %arg18[%c0_134, %c288] : memref<1x512xf32, #tpu.memory_space<vmem>>, vector<1x16xf32>
    tpu.vector_store %arg18[%c0_134, %c288], %106 {strides = array<i32>} : memref<1x512xf32, #tpu.memory_space<vmem>>, vector<1x16xf32>,
    %c19 = arith.constant 19 : index
    %c0_135 = arith.constant 0 : index
    %108 = vector.load %arg17[%c19, %c0_135] : memref<32x16xf32, #tpu.memory_space<vmem>>, vector<1x16xf32>
    %c0_136 = arith.constant 0 : index
    %c304 = arith.constant 304 : index
    %109 = vector.load %arg18[%c0_136, %c304] : memref<1x512xf32, #tpu.memory_space<vmem>>, vector<1x16xf32>
    tpu.vector_store %arg18[%c0_136, %c304], %108 {strides = array<i32>} : memref<1x512xf32, #tpu.memory_space<vmem>>, vector<1x16xf32>,
    %c20 = arith.constant 20 : index
    %c0_137 = arith.constant 0 : index
    %110 = vector.load %arg17[%c20, %c0_137] : memref<32x16xf32, #tpu.memory_space<vmem>>, vector<1x16xf32>
    %c0_138 = arith.constant 0 : index
    %c320 = arith.constant 320 : index
    %111 = vector.load %arg18[%c0_138, %c320] : memref<1x512xf32, #tpu.memory_space<vmem>>, vector<1x16xf32>
    tpu.vector_store %arg18[%c0_138, %c320], %110 {strides = array<i32>} : memref<1x512xf32, #tpu.memory_space<vmem>>, vector<1x16xf32>,
    %c21 = arith.constant 21 : index
    %c0_139 = arith.constant 0 : index
    %112 = vector.load %arg17[%c21, %c0_139] : memref<32x16xf32, #tpu.memory_space<vmem>>, vector<1x16xf32>
    %c0_140 = arith.constant 0 : index
    %c336 = arith.constant 336 : index
    %113 = vector.load %arg18[%c0_140, %c336] : memref<1x512xf32, #tpu.memory_space<vmem>>, vector<1x16xf32>
    tpu.vector_store %arg18[%c0_140, %c336], %112 {strides = array<i32>} : memref<1x512xf32, #tpu.memory_space<vmem>>, vector<1x16xf32>,
    %c22 = arith.constant 22 : index
    %c0_141 = arith.constant 0 : index
    %114 = vector.load %arg17[%c22, %c0_141] : memref<32x16xf32, #tpu.memory_space<vmem>>, vector<1x16xf32>
    %c0_142 = arith.constant 0 : index
    %c352 = arith.constant 352 : index
    %115 = vector.load %arg18[%c0_142, %c352] : memref<1x512xf32, #tpu.memory_space<vmem>>, vector<1x16xf32>
    tpu.vector_store %arg18[%c0_142, %c352], %114 {strides = array<i32>} : memref<1x512xf32, #tpu.memory_space<vmem>>, vector<1x16xf32>,
    %c23 = arith.constant 23 : index
    %c0_143 = arith.constant 0 : index
    %116 = vector.load %arg17[%c23, %c0_143] : memref<32x16xf32, #tpu.memory_space<vmem>>, vector<1x16xf32>
    %c0_144 = arith.constant 0 : index
    %c368 = arith.constant 368 : index
    %117 = vector.load %arg18[%c0_144, %c368] : memref<1x512xf32, #tpu.memory_space<vmem>>, vector<1x16xf32>
    tpu.vector_store %arg18[%c0_144, %c368], %116 {strides = array<i32>} : memref<1x512xf32, #tpu.memory_space<vmem>>, vector<1x16xf32>,
    %c24_145 = arith.constant 24 : index
    %c0_146 = arith.constant 0 : index
    %118 = vector.load %arg17[%c24_145, %c0_146] : memref<32x16xf32, #tpu.memory_space<vmem>>, vector<1x16xf32>
    %c0_147 = arith.constant 0 : index
    %c384 = arith.constant 384 : index
    %119 = vector.load %arg18[%c0_147, %c384] : memref<1x512xf32, #tpu.memory_space<vmem>>, vector<1x16xf32>
    tpu.vector_store %arg18[%c0_147, %c384], %118 {strides = array<i32>} : memref<1x512xf32, #tpu.memory_space<vmem>>, vector<1x16xf32>,
    %c25 = arith.constant 25 : index
    %c0_148 = arith.constant 0 : index
    %120 = vector.load %arg17[%c25, %c0_148] : memref<32x16xf32, #tpu.memory_space<vmem>>, vector<1x16xf32>
    %c0_149 = arith.constant 0 : index
    %c400 = arith.constant 400 : index
    %121 = vector.load %arg18[%c0_149, %c400] : memref<1x512xf32, #tpu.memory_space<vmem>>, vector<1x16xf32>
    tpu.vector_store %arg18[%c0_149, %c400], %120 {strides = array<i32>} : memref<1x512xf32, #tpu.memory_space<vmem>>, vector<1x16xf32>,
    %c26 = arith.constant 26 : index
    %c0_150 = arith.constant 0 : index
    %122 = vector.load %arg17[%c26, %c0_150] : memref<32x16xf32, #tpu.memory_space<vmem>>, vector<1x16xf32>
    %c0_151 = arith.constant 0 : index
    %c416 = arith.constant 416 : index
    %123 = vector.load %arg18[%c0_151, %c416] : memref<1x512xf32, #tpu.memory_space<vmem>>, vector<1x16xf32>
    tpu.vector_store %arg18[%c0_151, %c416], %122 {strides = array<i32>} : memref<1x512xf32, #tpu.memory_space<vmem>>, vector<1x16xf32>,
    %c27 = arith.constant 27 : index
    %c0_152 = arith.constant 0 : index
    %124 = vector.load %arg17[%c27, %c0_152] : memref<32x16xf32, #tpu.memory_space<vmem>>, vector<1x16xf32>
    %c0_153 = arith.constant 0 : index
    %c432 = arith.constant 432 : index
    %125 = vector.load %arg18[%c0_153, %c432] : memref<1x512xf32, #tpu.memory_space<vmem>>, vector<1x16xf32>
    tpu.vector_store %arg18[%c0_153, %c432], %124 {strides = array<i32>} : memref<1x512xf32, #tpu.memory_space<vmem>>, vector<1x16xf32>,
    %c28 = arith.constant 28 : index
    %c0_154 = arith.constant 0 : index
    %126 = vector.load %arg17[%c28, %c0_154] : memref<32x16xf32, #tpu.memory_space<vmem>>, vector<1x16xf32>
    %c0_155 = arith.constant 0 : index
    %c448 = arith.constant 448 : index
    %127 = vector.load %arg18[%c0_155, %c448] : memref<1x512xf32, #tpu.memory_space<vmem>>, vector<1x16xf32>
    tpu.vector_store %arg18[%c0_155, %c448], %126 {strides = array<i32>} : memref<1x512xf32, #tpu.memory_space<vmem>>, vector<1x16xf32>,
    %c29 = arith.constant 29 : index
    %c0_156 = arith.constant 0 : index
    %128 = vector.load %arg17[%c29, %c0_156] : memref<32x16xf32, #tpu.memory_space<vmem>>, vector<1x16xf32>
    %c0_157 = arith.constant 0 : index
    %c464 = arith.constant 464 : index
    %129 = vector.load %arg18[%c0_157, %c464] : memref<1x512xf32, #tpu.memory_space<vmem>>, vector<1x16xf32>
    tpu.vector_store %arg18[%c0_157, %c464], %128 {strides = array<i32>} : memref<1x512xf32, #tpu.memory_space<vmem>>, vector<1x16xf32>,
    %c30 = arith.constant 30 : index
    %c0_158 = arith.constant 0 : index
    %130 = vector.load %arg17[%c30, %c0_158] : memref<32x16xf32, #tpu.memory_space<vmem>>, vector<1x16xf32>
    %c0_159 = arith.constant 0 : index
    %c480 = arith.constant 480 : index
    %131 = vector.load %arg18[%c0_159, %c480] : memref<1x512xf32, #tpu.memory_space<vmem>>, vector<1x16xf32>
    tpu.vector_store %arg18[%c0_159, %c480], %130 {strides = array<i32>} : memref<1x512xf32, #tpu.memory_space<vmem>>, vector<1x16xf32>,
    %c31 = arith.constant 31 : index
    %c0_160 = arith.constant 0 : index
    %132 = vector.load %arg17[%c31, %c0_160] : memref<32x16xf32, #tpu.memory_space<vmem>>, vector<1x16xf32>
    %c0_161 = arith.constant 0 : index
    %c496 = arith.constant 496 : index
    %133 = vector.load %arg18[%c0_161, %c496] : memref<1x512xf32, #tpu.memory_space<vmem>>, vector<1x16xf32>
    tpu.vector_store %arg18[%c0_161, %c496], %132 {strides = array<i32>} : memref<1x512xf32, #tpu.memory_space<vmem>>, vector<1x16xf32>,
    %c0_162 = arith.constant 0 : index
    %c0_163 = arith.constant 0 : index
    %134 = vector.load %arg18[%c0_162, %c0_163] : memref<1x512xf32, #tpu.memory_space<vmem>>, vector<1x512xf32>
    %135 = vector.broadcast %134 : vector<1x512xf32> to vector<8x512xf32>
    %136 = arith.mulf %7, %135 : vector<8x512xf32>
    %c0_164 = arith.constant 0 : index
    %c0_165 = arith.constant 0 : index
    %137 = vector.load %arg12[%c0_164, %c0_165] : memref<8x1xf32, #tpu.memory_space<vmem>>, vector<8x1xf32>
    %138 = vector.broadcast %137 : vector<8x1xf32> to vector<8x512xf32>
    %139 = arith.mulf %136, %138 : vector<8x512xf32>
    %c0_166 = arith.constant 0 : index
    %c0_167 = arith.constant 0 : index
    %140 = vector.load %arg13[%c0_166, %c0_167] : memref<8x1xf32, #tpu.memory_space<vmem>>, vector<8x1xf32>
    %141 = vector.broadcast %140 : vector<8x1xf32> to vector<8x512xf32>
    %142 = arith.addf %139, %141 : vector<8x512xf32>
    %143 = arith.truncf %142 : vector<8x512xf32> to vector<8x512xbf16>
    %c0_168 = arith.constant 0 : index
    %c0_169 = arith.constant 0 : index
    %c0_170 = arith.constant 0 : index
    %144 = vector.load %arg14[%c0_168, %c0_169, %c0_170] : memref<1x8x512xbf16, #tpu.memory_space<vmem>>, vector<1x8x512xbf16>
    %145 = vector.shape_cast %144 : vector<1x8x512xbf16> to vector<8x512xbf16>
    %146 = vector.shape_cast %143 : vector<8x512xbf16> to vector<1x8x512xbf16>
    tpu.vector_store %arg14[%c0_168, %c0_169, %c0_170], %146 {strides = array<i32>} : memref<1x8x512xbf16, #tpu.memory_space<vmem>>, vector<1x8x512xbf16>,
    return
  }
  func.func @transform_0(%arg0: i32) -> (i32, i32, i32) {
    %c0_i32 = arith.constant 0 : i32
    %c0_i32_0 = arith.constant 0 : i32
    %c0_i32_1 = arith.constant 0 : i32
    return %arg0, %c0_i32, %c0_i32_0 : i32, i32, i32
  }
  func.func @transform_1(%arg0: i32) -> (i32, i32, i32) {
    %c0_i32 = arith.constant 0 : i32
    %c0_i32_0 = arith.constant 0 : i32
    %c0_i32_1 = arith.constant 0 : i32
    return %arg0, %c0_i32, %c0_i32_0 : i32, i32, i32
  }
  func.func @transform_2(%arg0: i32) -> (i32, i32, i32) {
    %c0_i32 = arith.constant 0 : i32
    %c0_i32_0 = arith.constant 0 : i32
    %c0_i32_1 = arith.constant 0 : i32
    return %arg0, %c0_i32, %c0_i32_0 : i32, i32, i32
  }
  func.func @transform_3(%arg0: i32) -> (i32, i32) {
    %c0_i32 = arith.constant 0 : i32
    %c0_i32_0 = arith.constant 0 : i32
    %c0_i32_1 = arith.constant 0 : i32
    return %c0_i32, %c0_i32_0 : i32, i32
  }
  func.func @transform_4(%arg0: i32) -> (i32, i32) {
    %c0_i32 = arith.constant 0 : i32
    %c0_i32_0 = arith.constant 0 : i32
    %c0_i32_1 = arith.constant 0 : i32
    return %c0_i32, %c0_i32_0 : i32, i32
  }
  func.func @transform_5(%arg0: i32) -> (i32, i32) {
    %c0_i32 = arith.constant 0 : i32
    %c0_i32_0 = arith.constant 0 : i32
    %c0_i32_1 = arith.constant 0 : i32
    return %c0_i32, %c0_i32_0 : i32, i32
  }
  func.func @transform_6(%arg0: i32) -> (i32, i32) {
    %c0_i32 = arith.constant 0 : i32
    %c0_i32_0 = arith.constant 0 : i32
    %c0_i32_1 = arith.constant 0 : i32
    return %c0_i32, %c0_i32_0 : i32, i32
  }
  func.func @transform_7(%arg0: i32) -> (i32, i32) {
    %c0_i32 = arith.constant 0 : i32
    %c0_i32_0 = arith.constant 0 : i32
    %c0_i32_1 = arith.constant 0 : i32
    return %c0_i32, %c0_i32_0 : i32, i32
  }
  func.func @transform_8(%arg0: i32) -> (i32, i32) {
    %c0_i32 = arith.constant 0 : i32
    %c0_i32_0 = arith.constant 0 : i32
    %c0_i32_1 = arith.constant 0 : i32
    return %c0_i32, %c0_i32_0 : i32, i32
  }
  func.func @transform_9(%arg0: i32) -> (i32, i32) {
    %c0_i32 = arith.constant 0 : i32
    %c0_i32_0 = arith.constant 0 : i32
    %c0_i32_1 = arith.constant 0 : i32
    return %c0_i32, %c0_i32_0 : i32, i32
  }
  func.func @transform_10(%arg0: i32) -> (i32, i32) {
    %c0_i32 = arith.constant 0 : i32
    %c0_i32_0 = arith.constant 0 : i32
    %c0_i32_1 = arith.constant 0 : i32
    return %c0_i32, %c0_i32_0 : i32, i32
  }
  func.func @transform_11(%arg0: i32) -> (i32, i32) {
    %c0_i32 = arith.constant 0 : i32
    %c0_i32_0 = arith.constant 0 : i32
    %c0_i32_1 = arith.constant 0 : i32
    return %c0_i32, %c0_i32_0 : i32, i32
  }
  func.func @transform_12(%arg0: i32) -> (i32, i32) {
    %c0_i32 = arith.constant 0 : i32
    %c0_i32_0 = arith.constant 0 : i32
    %c0_i32_1 = arith.constant 0 : i32
    return %c0_i32, %c0_i32_0 : i32, i32
  }
  func.func @transform_13(%arg0: i32) -> (i32, i32, i32) {
    %c0_i32 = arith.constant 0 : i32
    %c0_i32_0 = arith.constant 0 : i32
    %c0_i32_1 = arith.constant 0 : i32
    return %arg0, %c0_i32, %c0_i32_0 : i32, i32, i32
  }
}

</mosaic_0001>

<llo_original>
// kernel: attention_block_forward.1
$region0: #{attention_block_forward.1}
  #allocation0 [shape = 'u32[]', space=smem, size = 0x4, offset = 0x4, fixed_abs, tag = 'smem constant byte address 0x4 - core index']
  #allocation1 [shape = 'u32[144,128]{1,0:T(1,128)}', space=vmem, size = 0x12000, scoped, tag = 'internal scratch']
  #allocation2 [shape = 'f32[1,128]{1,0:T(1,128)}', space=vmem, size = 0x200, scoped, tag = 'scratch operand']
  #allocation3 [shape = 'f32[16,8]{1,0:T(8,128)}', space=vmem, size = 0x2000, scoped, tag = 'scratch operand']
  #allocation4 [shape = 'f32[32,16]{1,0:T(8,128)}', space=vmem, size = 0x4000, scoped, tag = 'scratch operand']
  #allocation5 [shape = 'f32[1,512]{1,0:T(1,128)}', space=vmem, size = 0x800, scoped, tag = 'scratch operand']
  #allocation6 [shape = 'f32[1,1]{1,0:T(1,128)S(1)}', space=vmem, size = 0x200, scoped, tag = 'scoped memory for attention_block_forward.1']
  %s0 = inlined_call_operand.vmem [shape: bf16[1,8,512], index: 0, kind: input, shape index: {}]
  %s1 = inlined_call_operand.vmem [shape: bf16[1,32,128], index: 1, kind: input, shape index: {}]
  %s2 = inlined_call_operand.vmem [shape: bf16[1,8,128], index: 2, kind: input, shape index: {}]
  %s3 = inlined_call_operand.vmem [shape: bf16[8,32], index: 3, kind: input, shape index: {}]
  %s4 = inlined_call_operand.vmem [shape: bf16[8,8], index: 4, kind: input, shape index: {}]
  %s5 = inlined_call_operand.vmem [shape: f32[8,1], index: 5, kind: input, shape index: {}]
  %s6 = inlined_call_operand.vmem [shape: f32[8,1], index: 6, kind: input, shape index: {}]
  %s7 = inlined_call_operand.<no memory space> [shape: f32[1,1], index: 7, kind: input, shape index: {}]
  %s8 = inlined_call_operand.vmem [shape: f32[8,16], index: 8, kind: input, shape index: {}]
  %s9 = inlined_call_operand.vmem [shape: f32[32,16], index: 9, kind: input, shape index: {}]
  %s10 = inlined_call_operand.vmem [shape: bf16[8,8], index: 10, kind: input, shape index: {}]
  %s11 = inlined_call_operand.vmem [shape: f32[8,1], index: 11, kind: input, shape index: {}]
  %s12 = inlined_call_operand.vmem [shape: f32[8,1], index: 12, kind: input, shape index: {}]
  %s13 = inlined_call_operand.vmem [shape: bf16[1,8,512], index: 13, kind: output, shape index: {}]
  %s14 = sld [smem:[#allocation0]]
  $region62: #{attention_block_forward.1} parent=0
    _
  %s16 = ssub.s32 1, %s14
  %s17 = scalar_select 0, %s16, %s14
  %v18 = vstv %s7
  %19 = vst [vmem:[#allocation6] sm:$0x1] %v18
  // Predicated region
  $region2: #{attention_block_forward.1} parent=0 // pred_check
    _
  $region3: #{attention_block_forward.1} parent=0 // pred_check_branch
    %21 = sbr.rel (0) target = $region5
  $region4: #{attention_block_forward.1} parent=0 // pred_region
    _
  $region5: #{attention_block_forward.1} parent=0 // pred_fallthru
    _
  // Predicated region
  $region6: #{attention_block_forward.1} parent=0 // pred_check
    _
  $region7: #{attention_block_forward.1} parent=0 // pred_check_branch
    %23 = sbr.rel (0) target = $region9
  $region8: #{attention_block_forward.1} parent=0 // pred_region
    _
  $region9: #{attention_block_forward.1} parent=0 // pred_fallthru
    _
  // Predicated region
  $region10: #{attention_block_forward.1} parent=0 // pred_check
    _
  $region11: #{attention_block_forward.1} parent=0 // pred_check_branch
    %25 = sbr.rel (0) target = $region13
  $region12: #{attention_block_forward.1} parent=0 // pred_region
    _
  $region13: #{attention_block_forward.1} parent=0 // pred_fallthru
    _
  // Predicated region
  $region14: #{attention_block_forward.1} parent=0 // pred_check
    _
  $region15: #{attention_block_forward.1} parent=0 // pred_check_branch
    %27 = sbr.rel (0) target = $region17
  $region16: #{attention_block_forward.1} parent=0 // pred_region
    _
  $region17: #{attention_block_forward.1} parent=0 // pred_fallthru
    _
  // Predicated region
  $region18: #{attention_block_forward.1} parent=0 // pred_check
    _
  $region19: #{attention_block_forward.1} parent=0 // pred_check_branch
    %29 = sbr.rel (0) target = $region21
  $region20: #{attention_block_forward.1} parent=0 // pred_region
    _
  $region21: #{attention_block_forward.1} parent=0 // pred_fallthru
    _
  // Predicated region
  $region22: #{attention_block_forward.1} parent=0 // pred_check
    _
  $region23: #{attention_block_forward.1} parent=0 // pred_check_branch
    %31 = sbr.rel (0) target = $region25
  $region24: #{attention_block_forward.1} parent=0 // pred_region
    _
  $region25: #{attention_block_forward.1} parent=0 // pred_fallthru
    _
  // Predicated region
  $region26: #{attention_block_forward.1} parent=0 // pred_check
    _
  $region27: #{attention_block_forward.1} parent=0 // pred_check_branch
    %33 = sbr.rel (0) target = $region29
  $region28: #{attention_block_forward.1} parent=0 // pred_region
    _
  $region29: #{attention_block_forward.1} parent=0 // pred_fallthru
    _
  // Predicated region
  $region30: #{attention_block_forward.1} parent=0 // pred_check
    _
  $region31: #{attention_block_forward.1} parent=0 // pred_check_branch
    %35 = sbr.rel (0) target = $region33
  $region32: #{attention_block_forward.1} parent=0 // pred_region
    _
  $region33: #{attention_block_forward.1} parent=0 // pred_fallthru
    _
  // Predicated region
  $region34: #{attention_block_forward.1} parent=0 // pred_check
    _
  $region35: #{attention_block_forward.1} parent=0 // pred_check_branch
    %37 = sbr.rel (0) target = $region37
  $region36: #{attention_block_forward.1} parent=0 // pred_region
    _
  $region37: #{attention_block_forward.1} parent=0 // pred_fallthru
    _
  // Predicated region
  $region38: #{attention_block_forward.1} parent=0 // pred_check
    _
  $region39: #{attention_block_forward.1} parent=0 // pred_check_branch
    %39 = sbr.rel (0) target = $region41
  $region40: #{attention_block_forward.1} parent=0 // pred_region
    _
  $region41: #{attention_block_forward.1} parent=0 // pred_fallthru
    _
  // Predicated region
  $region42: #{attention_block_forward.1} parent=0 // pred_check
    _
  $region43: #{attention_block_forward.1} parent=0 // pred_check_branch
    %41 = sbr.rel (0) target = $region45
  $region44: #{attention_block_forward.1} parent=0 // pred_region
    _
  $region45: #{attention_block_forward.1} parent=0 // pred_fallthru
    _
  // Predicated region
  $region46: #{attention_block_forward.1} parent=0 // pred_check
    _
  $region47: #{attention_block_forward.1} parent=0 // pred_check_branch
    %43 = sbr.rel (0) target = $region49
  $region48: #{attention_block_forward.1} parent=0 // pred_region
    _
  $region49: #{attention_block_forward.1} parent=0 // pred_fallthru
    _
  // Predicated region
  $region50: #{attention_block_forward.1} parent=0 // pred_check
    _
  $region51: #{attention_block_forward.1} parent=0 // pred_check_branch
    %45 = sbr.rel (0) target = $region53
  $region52: #{attention_block_forward.1} parent=0 // pred_region
    _
  $region53: #{attention_block_forward.1} parent=0 // pred_fallthru
    _
  %v47 = vld [vmem:[%s0] sm:$0xff]
  %v48 = vld [vmem:[%s0 + $0x8] sm:$0xff]
  %v49 = vld [vmem:[%s1] sm:$0xf]
  %v50 = vld [vmem:[%s1 + $0x4] sm:$0xf]
  %v51 = vld [vmem:[%s1 + $0x8] sm:$0xf]
  %v52 = vld [vmem:[%s1 + $0xc] sm:$0xf]
  %v53 = vld [vmem:[%s2] sm:$0xf]
  %v54 = vld [vmem:[%s10] sm:$0xf]
  %v57 = vunpack.c.l.b16 %v47
  %v58 = vunpack.c.h.b16 %v47
  %v59 = vunpack.c.l.b16 %v48
  %v60 = vunpack.c.h.b16 %v48
  %v61 = vpack.c.b16 %v57, %v57
  %v62 = vpack.c.b16 %v58, %v58
  %v63 = vpack.c.b16 %v59, %v59
  %v64 = vpack.c.b16 %v60, %v60
  %vm65 = vcmask 64512
  %v67 = vsel %vm65, %v54, 0
  %vm69 = vcmask 1043456
  %v71 = vsel %vm69, %v61, 0
  %v74 = vsel %vm69, %v62, 0
  %v77 = vsel %vm69, %v63, 0
  %v80 = vsel %vm69, %v64, 0
  %82 = vmatprep.subr.bf16.mxu0 0
  %83 = vmatpush1.bf16.msra.mxu0 0
  %84 = vmatprep.subr.bf16.mxu0 0
  %85 = vmatpush1.bf16.msra.mxu0 0
  %86 = vmatprep.subr.bf16.mxu0 0
  %87 = vmatpush1.bf16.msra.mxu0 0
  %88 = vmatprep.subr.bf16.mxu0 0
  %89 = vmatpush1.bf16.msra.mxu0 0
  %90 = vmatprep.subr.bf16.mxu0 0
  %91 = vmatpush1.bf16.msra.mxu0 0
  %92 = vmatprep.subr.bf16.mxu0 0
  %93 = vmatpush1.bf16.msra.mxu0 0
  %94 = vmatprep.subr.bf16.mxu0 0
  %95 = vmatpush1.bf16.msra.mxu0 0
  %96 = vmatprep.subr.bf16.mxu0 %v74
  %97 = vmatpush1.bf16.msra.mxu0 %v71
  %98 = vmatprep.subr.bf16.mxu0 0
  %99 = vmatpush2.bf16.msra.mxu0 0
  %100 = vmatprep.subr.bf16.mxu0 0
  %101 = vmatpush2.bf16.msra.mxu0 0
  %102 = vmatprep.subr.bf16.mxu0 0
  %103 = vmatpush2.bf16.msra.mxu0 0
  %104 = vmatprep.subr.bf16.mxu0 0
  %105 = vmatpush2.bf16.msra.mxu0 0
  %106 = vmatprep.subr.bf16.mxu0 0
  %107 = vmatpush2.bf16.msra.mxu0 0
  %108 = vmatprep.subr.bf16.mxu0 0
  %109 = vmatpush2.bf16.msra.mxu0 0
  %110 = vmatprep.subr.bf16.mxu0 0
  %111 = vmatpush2.bf16.msra.mxu0 0
  %112 = vmatprep.subr.bf16.mxu0 0
  %113 = vmatpush2.bf16.msra.mxu0 0
  %114 = vmatprep.mubr.bf16.mxu0 0
  %115 = vmatmul.mubr.bf16.gmra.mxu0 %v67
  %v116 = vpop.f32.mrf.mxu0
  %v117 = vadd.f32 0.0, %v116
  %v118 = vpop.f32.mrf.mxu0
  %v119 = vadd.f32 0.0, %v118
  %v120 = vpop.f32.mrf.mxu0
  %v121 = vpop.f32.mrf.mxu0
  %122 = vdwg.mxu0
  %123 = vmatprep.subr.bf16.mxu0 0
  %124 = vmatpush1.bf16.msra.mxu0 0
  %125 = vmatprep.subr.bf16.mxu0 0
  %126 = vmatpush1.bf16.msra.mxu0 0
  %127 = vmatprep.subr.bf16.mxu0 0
  %128 = vmatpush1.bf16.msra.mxu0 0
  %129 = vmatprep.subr.bf16.mxu0 0
  %130 = vmatpush1.bf16.msra.mxu0 0
  %131 = vmatprep.subr.bf16.mxu0 0
  %132 = vmatpush1.bf16.msra.mxu0 0
  %133 = vmatprep.subr.bf16.mxu0 0
  %134 = vmatpush1.bf16.msra.mxu0 0
  %135 = vmatprep.subr.bf16.mxu0 0
  %136 = vmatpush1.bf16.msra.mxu0 0
  %137 = vmatprep.subr.bf16.mxu0 %v80
  %138 = vmatpush1.bf16.msra.mxu0 %v77
  %139 = vmatprep.subr.bf16.mxu0 0
  %140 = vmatpush2.bf16.msra.mxu0 0
  %141 = vmatprep.subr.bf16.mxu0 0
  %142 = vmatpush2.bf16.msra.mxu0 0
  %143 = vmatprep.subr.bf16.mxu0 0
  %144 = vmatpush2.bf16.msra.mxu0 0
  %145 = vmatprep.subr.bf16.mxu0 0
  %146 = vmatpush2.bf16.msra.mxu0 0
  %147 = vmatprep.subr.bf16.mxu0 0
  %148 = vmatpush2.bf16.msra.mxu0 0
  %149 = vmatprep.subr.bf16.mxu0 0
  %150 = vmatpush2.bf16.msra.mxu0 0
  %151 = vmatprep.subr.bf16.mxu0 0
  %152 = vmatpush2.bf16.msra.mxu0 0
  %153 = vmatprep.subr.bf16.mxu0 0
  %154 = vmatpush2.bf16.msra.mxu0 0
  %155 = vmatprep.mubr.bf16.mxu0 0
  %156 = vmatmul.mubr.bf16.gmra.mxu0 %v67
  %v157 = vpop.f32.mrf.mxu0
  %v158 = vadd.f32 0.0, %v157
  %v159 = vpop.f32.mrf.mxu0
  %v160 = vadd.f32 0.0, %v159
  %v161 = vpop.f32.mrf.mxu0
  %v162 = vpop.f32.mrf.mxu0
  %163 = vdwg.mxu0
  %v164 = vld [vmem:[%s3] sm:$0xf]
  %v165 = vld [vmem:[%s4] sm:$0xf]
  %v166 = vld [vmem:[%s5] sm:$0xff]
  %168 = vset.pattern.permute.xlu0 0
  %169 = vperm.xlu0 %168, %v166
  %v170 = vpop.permute.xlu0 %169
  %v173 = vsel %vm65, %v165, 0
  %v176 = vsel %vm69, %v53, 0
  %178 = vmatprep.subr.bf16.mxu0 0
  %179 = vmatpush1.bf16.msra.mxu0 0
  %180 = vmatprep.subr.bf16.mxu0 0
  %181 = vmatpush1.bf16.msra.mxu0 0
  %182 = vmatprep.subr.bf16.mxu0 0
  %183 = vmatpush1.bf16.msra.mxu0 0
  %184 = vmatprep.subr.bf16.mxu0 0
  %185 = vmatpush1.bf16.msra.mxu0 0
  %186 = vmatprep.subr.bf16.mxu0 0
  %187 = vmatpush1.bf16.msra.mxu0 0
  %188 = vmatprep.subr.bf16.mxu0 0
  %189 = vmatpush1.bf16.msra.mxu0 0
  %190 = vmatprep.subr.bf16.mxu0 0
  %191 = vmatpush1.bf16.msra.mxu0 0
  %192 = vmatprep.subr.bf16.mxu0 0
  %193 = vmatpush1.bf16.msra.mxu0 %v176
  %194 = vmatprep.subr.bf16.mxu0 0
  %195 = vmatpush2.bf16.msra.mxu0 0
  %196 = vmatprep.subr.bf16.mxu0 0
  %197 = vmatpush2.bf16.msra.mxu0 0
  %198 = vmatprep.subr.bf16.mxu0 0
  %199 = vmatpush2.bf16.msra.mxu0 0
  %200 = vmatprep.subr.bf16.mxu0 0
  %201 = vmatpush2.bf16.msra.mxu0 0
  %202 = vmatprep.subr.bf16.mxu0 0
  %203 = vmatpush2.bf16.msra.mxu0 0
  %204 = vmatprep.subr.bf16.mxu0 0
  %205 = vmatpush2.bf16.msra.mxu0 0
  %206 = vmatprep.subr.bf16.mxu0 0
  %207 = vmatpush2.bf16.msra.mxu0 0
  %208 = vmatprep.subr.bf16.mxu0 0
  %209 = vmatpush2.bf16.msra.mxu0 0
  %210 = vmatprep.mubr.bf16.mxu0 0
  %211 = vmatmul.mubr.bf16.gmra.mxu0 %v173
  %v212 = vpop.f32.mrf.mxu0
  %v213 = vadd.f32 %v170, %v212
  %v214 = vpop.f32.mrf.mxu0
  %v215 = vpop.f32.mrf.mxu0
  %v216 = vpop.f32.mrf.mxu0
  %217 = vdwg.mxu0
  %v222 = vunpack.c.l.b16 %v49
  %v223 = vunpack.c.l.b16 %v50
  %v224 = vunpack.c.l.b16 %v51
  %v225 = vunpack.c.l.b16 %v52
  %v226 = vpack.c.b16 %v223, %v222
  %v227 = vpack.c.b16 %v225, %v224
  %vm230 = vcmask 261120
  %v232 = vsel %vm230, %v164, 0
  %234 = vmatprep.subr.bf16.mxu0 0
  %235 = vmatpush1.bf16.msra.mxu0 0
  %236 = vmatprep.subr.bf16.mxu0 0
  %237 = vmatpush1.bf16.msra.mxu0 0
  %238 = vmatprep.subr.bf16.mxu0 0
  %239 = vmatpush1.bf16.msra.mxu0 0
  %240 = vmatprep.subr.bf16.mxu0 0
  %241 = vmatpush1.bf16.msra.mxu0 0
  %242 = vmatprep.subr.bf16.mxu0 0
  %243 = vmatpush1.bf16.msra.mxu0 0
  %244 = vmatprep.subr.bf16.mxu0 0
  %245 = vmatpush1.bf16.msra.mxu0 0
  %246 = vmatprep.subr.bf16.mxu0 0
  %247 = vmatpush1.bf16.msra.mxu0 %v227
  %248 = vmatprep.subr.bf16.mxu0 0
  %249 = vmatpush1.bf16.msra.mxu0 %v226
  %250 = vmatprep.subr.bf16.mxu0 0
  %251 = vmatpush2.bf16.msra.mxu0 0
  %252 = vmatprep.subr.bf16.mxu0 0
  %253 = vmatpush2.bf16.msra.mxu0 0
  %254 = vmatprep.subr.bf16.mxu0 0
  %255 = vmatpush2.bf16.msra.mxu0 0
  %256 = vmatprep.subr.bf16.mxu0 0
  %257 = vmatpush2.bf16.msra.mxu0 0
  %258 = vmatprep.subr.bf16.mxu0 0
  %259 = vmatpush2.bf16.msra.mxu0 0
  %260 = vmatprep.subr.bf16.mxu0 0
  %261 = vmatpush2.bf16.msra.mxu0 0
  %262 = vmatprep.subr.bf16.mxu0 0
  %263 = vmatpush2.bf16.msra.mxu0 0
  %264 = vmatprep.subr.bf16.mxu0 0
  %265 = vmatpush2.bf16.msra.mxu0 0
  %266 = vmatprep.mubr.bf16.mxu0 0
  %267 = vmatmul.mubr.bf16.gmra.mxu0 %v232
  %v268 = vpop.f32.mrf.mxu0
  %v269 = vadd.f32 %v213, %v268
  %v270 = vpop.f32.mrf.mxu0
  %v271 = vpop.f32.mrf.mxu0
  %v272 = vpop.f32.mrf.mxu0
  %273 = vdwg.mxu0
  %v274 = vmax.f32 %v269, 0.0
  %v275 = vld [vmem:[%s6] sm:$0xff]
  %277 = vset.pattern.permute.xlu0 0
  %278 = vperm.xlu0 %277, %v275
  %v279 = vpop.permute.xlu0 %278
  %v281 = vmul.f32 %v274, %v279
  %v282 = vrot.slane %v281, 4
  %v283 = vadd.f32 %v281, %v282
  %v284 = vrot.slane %v283, 2
  %v285 = vadd.f32 %v283, %v284
  %v286 = vrot.slane %v285, 1
  %v287 = vadd.f32 %v285, %v286
  %v288 = vld [vmem:[#allocation6] sm:$0x1]
  %290 = vset.pattern.permute.xlu0 0
  %291 = vperm.xlu0 %290, %v288
  %v292 = vpop.permute.xlu0 %291
  %v294 = vlaneseq
  %v295 = vshrl.u32 %v294, 7
  %v296 = vsub.s32 0, %v295
  %v297 = vrot.slane %v292, %v296
  %v298 = vadd.f32 %v287, %v297
  %v299 = vxor.u32 %v298, 2147483648
  %v300 = vmul.f32 %v299, 1.442695
  %v301 = vpow.pop %v300
  %v302 = vadd.f32 %v301, 1.0
  %v303 = vrcp.pop %v302
  %v304 = vmul.f32 1.0, %v303
  %305 = vst [vmem:[#allocation2] sm:$0x1] %v304
  %v306 = vld [vmem:[#allocation2] sm:$0x1]
  %vm307 = vcmask 57344
  %308 = vst.msk [vmem:[#allocation3] sm:$0x1] %vm307, %v306
  %v309 = vld [vmem:[#allocation2] sm:$0x1]
  %v311 = vlaneseq
  %v312 = vshrl.u32 %v311, 7
  %v313 = vsub.s32 0, %v312
  %v314 = vrot.slane %v309, %v313
  %315 = vrot.lane.b32.xlu0 %v314, 120
  %v316 = vpop.permute.xlu0 %315
  %318 = vst.msk [vmem:[#allocation3 + $0x1] sm:$0x1] %vm307, %v316
  %v319 = vld [vmem:[#allocation2] sm:$0x1]
  %v321 = vlaneseq
  %v322 = vshrl.u32 %v321, 7
  %v323 = vsub.s32 0, %v322
  %v324 = vrot.slane %v319, %v323
  %325 = vrot.lane.b32.xlu0 %v324, 112
  %v326 = vpop.permute.xlu0 %325
  %328 = vst.msk [vmem:[#allocation3 + $0x2] sm:$0x1] %vm307, %v326
  %v329 = vld [vmem:[#allocation2] sm:$0x1]
  %v331 = vlaneseq
  %v332 = vshrl.u32 %v331, 7
  %v333 = vsub.s32 0, %v332
  %v334 = vrot.slane %v329, %v333
  %335 = vrot.lane.b32.xlu0 %v334, 104
  %v336 = vpop.permute.xlu0 %335
  %338 = vst.msk [vmem:[#allocation3 + $0x3] sm:$0x1] %vm307, %v336
  %v339 = vld [vmem:[#allocation2] sm:$0x1]
  %v341 = vlaneseq
  %v342 = vshrl.u32 %v341, 7
  %v343 = vsub.s32 0, %v342
  %v344 = vrot.slane %v339, %v343
  %345 = vrot.lane.b32.xlu0 %v344, 96
  %v346 = vpop.permute.xlu0 %345
  %348 = vst.msk [vmem:[#allocation3 + $0x4] sm:$0x1] %vm307, %v346
  %v349 = vld [vmem:[#allocation2] sm:$0x1]
  %v351 = vlaneseq
  %v352 = vshrl.u32 %v351, 7
  %v353 = vsub.s32 0, %v352
  %v354 = vrot.slane %v349, %v353
  %355 = vrot.lane.b32.xlu0 %v354, 88
  %v356 = vpop.permute.xlu0 %355
  %358 = vst.msk [vmem:[#allocation3 + $0x5] sm:$0x1] %vm307, %v356
  %v359 = vld [vmem:[#allocation2] sm:$0x1]
  %v361 = vlaneseq
  %v362 = vshrl.u32 %v361, 7
  %v363 = vsub.s32 0, %v362
  %v364 = vrot.slane %v359, %v363
  %365 = vrot.lane.b32.xlu0 %v364, 80
  %v366 = vpop.permute.xlu0 %365
  %368 = vst.msk [vmem:[#allocation3 + $0x6] sm:$0x1] %vm307, %v366
  %v369 = vld [vmem:[#allocation2] sm:$0x1]
  %v371 = vlaneseq
  %v372 = vshrl.u32 %v371, 7
  %v373 = vsub.s32 0, %v372
  %v374 = vrot.slane %v369, %v373
  %375 = vrot.lane.b32.xlu0 %v374, 72
  %v376 = vpop.permute.xlu0 %375
  %378 = vst.msk [vmem:[#allocation3 + $0x7] sm:$0x1] %vm307, %v376
  %v379 = vld [vmem:[#allocation2] sm:$0x1]
  %v381 = vlaneseq
  %v382 = vshrl.u32 %v381, 7
  %v383 = vsub.s32 0, %v382
  %v384 = vrot.slane %v379, %v383
  %385 = vrot.lane.b32.xlu0 %v384, 64
  %v386 = vpop.permute.xlu0 %385
  %388 = vst.msk [vmem:[#allocation3 + $0x8] sm:$0x1] %vm307, %v386
  %v389 = vld [vmem:[#allocation2] sm:$0x1]
  %v391 = vlaneseq
  %v392 = vshrl.u32 %v391, 7
  %v393 = vsub.s32 0, %v392
  %v394 = vrot.slane %v389, %v393
  %395 = vrot.lane.b32.xlu0 %v394, 56
  %v396 = vpop.permute.xlu0 %395
  %398 = vst.msk [vmem:[#allocation3 + $0x9] sm:$0x1] %vm307, %v396
  %v399 = vld [vmem:[#allocation2] sm:$0x1]
  %v401 = vlaneseq
  %v402 = vshrl.u32 %v401, 7
  %v403 = vsub.s32 0, %v402
  %v404 = vrot.slane %v399, %v403
  %405 = vrot.lane.b32.xlu0 %v404, 48
  %v406 = vpop.permute.xlu0 %405
  %408 = vst.msk [vmem:[#allocation3 + $0xa] sm:$0x1] %vm307, %v406
  %v409 = vld [vmem:[#allocation2] sm:$0x1]
  %v411 = vlaneseq
  %v412 = vshrl.u32 %v411, 7
  %v413 = vsub.s32 0, %v412
  %v414 = vrot.slane %v409, %v413
  %415 = vrot.lane.b32.xlu0 %v414, 40
  %v416 = vpop.permute.xlu0 %415
  %418 = vst.msk [vmem:[#allocation3 + $0xb] sm:$0x1] %vm307, %v416
  %v419 = vld [vmem:[#allocation2] sm:$0x1]
  %v421 = vlaneseq
  %v422 = vshrl.u32 %v421, 7
  %v423 = vsub.s32 0, %v422
  %v424 = vrot.slane %v419, %v423
  %425 = vrot.lane.b32.xlu0 %v424, 32
  %v426 = vpop.permute.xlu0 %425
  %428 = vst.msk [vmem:[#allocation3 + $0xc] sm:$0x1] %vm307, %v426
  %v429 = vld [vmem:[#allocation2] sm:$0x1]
  %v431 = vlaneseq
  %v432 = vshrl.u32 %v431, 7
  %v433 = vsub.s32 0, %v432
  %v434 = vrot.slane %v429, %v433
  %435 = vrot.lane.b32.xlu0 %v434, 24
  %v436 = vpop.permute.xlu0 %435
  %438 = vst.msk [vmem:[#allocation3 + $0xd] sm:$0x1] %vm307, %v436
  %v439 = vld [vmem:[#allocation2] sm:$0x1]
  %v441 = vlaneseq
  %v442 = vshrl.u32 %v441, 7
  %v443 = vsub.s32 0, %v442
  %v444 = vrot.slane %v439, %v443
  %445 = vrot.lane.b32.xlu0 %v444, 16
  %v446 = vpop.permute.xlu0 %445
  %448 = vst.msk [vmem:[#allocation3 + $0xe] sm:$0x1] %vm307, %v446
  %v449 = vld [vmem:[#allocation2] sm:$0x1]
  %v451 = vlaneseq
  %v452 = vshrl.u32 %v451, 7
  %v453 = vsub.s32 0, %v452
  %v454 = vrot.slane %v449, %v453
  %455 = vrot.lane.b32.xlu0 %v454, 8
  %v456 = vpop.permute.xlu0 %455
  %458 = vst.msk [vmem:[#allocation3 + $0xf] sm:$0x1] %vm307, %v456
  %v459 = vld [vmem:[#allocation3] sm:$0xff]
  %v460 = vld [vmem:[#allocation3 + $0x8] sm:$0xff]
  %v461 = vld [vmem:[%s8] sm:$0xff]
  %v463 = vsel %vm65, %v459, 0
  %v466 = vsel %vm65, %v460, 0
  %468 = vmatprep.subr.mxu0 0.0
  %469 = vmatpush1.msra.mxu0 0.0
  %470 = vmatprep.subr.mxu0 0.0
  %471 = vmatpush1.msra.mxu0 0.0
  %472 = vmatprep.subr.mxu0 0.0
  %473 = vmatpush1.msra.mxu0 0.0
  %474 = vmatprep.subr.mxu0 0.0
  %475 = vmatpush1.msra.mxu0 0.0
  %476 = vmatprep.subr.mxu0 0.0
  %477 = vmatpush1.msra.mxu0 0.0
  %478 = vmatprep.subr.mxu0 0.0
  %479 = vmatpush1.msra.mxu0 0.0
  %480 = vmatprep.subr.mxu0 0.0
  %481 = vmatpush1.msra.mxu0 0.0
  %482 = vmatprep.subr.mxu0 0.0
  %483 = vmatpush1.msra.mxu0 0.0
  %484 = vmatprep.subr.mxu0 0.0
  %485 = vmatpush1.msra.mxu0 0.0
  %486 = vmatprep.subr.mxu0 0.0
  %487 = vmatpush1.msra.mxu0 0.0
  %488 = vmatprep.subr.mxu0 0.0
  %489 = vmatpush1.msra.mxu0 0.0
  %490 = vmatprep.subr.mxu0 0.0
  %491 = vmatpush1.msra.mxu0 0.0
  %492 = vmatprep.subr.mxu0 0.0
  %493 = vmatpush1.msra.mxu0 0.0
  %494 = vmatprep.subr.mxu0 0.0
  %495 = vmatpush1.msra.mxu0 0.0
  %496 = vmatprep.subr.mxu0 0.0
  %497 = vmatpush1.msra.mxu0 0.0
  %498 = vmatprep.subr.mxu0 0.0
  %499 = vmatpush1.msra.mxu0 %v461
  %500 = vmatprep.subr.mxu0 0.0
  %501 = vmatpush2.msra.mxu0 0.0
  %502 = vmatprep.subr.mxu0 0.0
  %503 = vmatpush2.msra.mxu0 0.0
  %504 = vmatprep.subr.mxu0 0.0
  %505 = vmatpush2.msra.mxu0 0.0
  %506 = vmatprep.subr.mxu0 0.0
  %507 = vmatpush2.msra.mxu0 0.0
  %508 = vmatprep.subr.mxu0 0.0
  %509 = vmatpush2.msra.mxu0 0.0
  %510 = vmatprep.subr.mxu0 0.0
  %511 = vmatpush2.msra.mxu0 0.0
  %512 = vmatprep.subr.mxu0 0.0
  %513 = vmatpush2.msra.mxu0 0.0
  %514 = vmatprep.subr.mxu0 0.0
  %515 = vmatpush2.msra.mxu0 0.0
  %516 = vmatprep.subr.mxu0 0.0
  %517 = vmatpush2.msra.mxu0 0.0
  %518 = vmatprep.subr.mxu0 0.0
  %519 = vmatpush2.msra.mxu0 0.0
  %520 = vmatprep.subr.mxu0 0.0
  %521 = vmatpush2.msra.mxu0 0.0
  %522 = vmatprep.subr.mxu0 0.0
  %523 = vmatpush2.msra.mxu0 0.0
  %524 = vmatprep.subr.mxu0 0.0
  %525 = vmatpush2.msra.mxu0 0.0
  %526 = vmatprep.subr.mxu0 0.0
  %527 = vmatpush2.msra.mxu0 0.0
  %528 = vmatprep.subr.mxu0 0.0
  %529 = vmatpush2.msra.mxu0 0.0
  %530 = vmatprep.subr.mxu0 0.0
  %531 = vmatpush2.msra.mxu0 0.0
  %532 = vmatprep.mubr.f32.mxu0 0.0
  %533 = vmatmul.mubr.f32.gmra.mxu0 %v463
  %v534 = vpop.f32.mrf.mxu0
  %v535 = vadd.f32 0.0, %v534
  %v536 = vpop.f32.mrf.mxu0
  %537 = vmatprep.mubr.f32.mxu0 0.0
  %538 = vmatmul.mubr.f32.gmra.mxu0 %v466
  %v539 = vpop.f32.mrf.mxu0
  %v540 = vadd.f32 0.0, %v539
  %v541 = vpop.f32.mrf.mxu0
  %542 = vdwg.mxu0
  %v543 = vld [vmem:[%s9] sm:$0xff]
  %v544 = vld [vmem:[%s9 + $0x8] sm:$0xff]
  %v545 = vld [vmem:[%s9 + $0x10] sm:$0xff]
  %v546 = vld [vmem:[%s9 + $0x18] sm:$0xff]
  %vm547 = vcmask 130048
  %v549 = vsel %vm547, %v543, 0
  %v552 = vsel %vm547, %v544, 0
  %v555 = vsel %vm547, %v545, 0
  %v558 = vsel %vm547, %v546, 0
  %560 = vmatprep.subr.mxu0 0.0
  %561 = vmatpush1.msra.mxu0 0.0
  %562 = vmatprep.subr.mxu0 0.0
  %563 = vmatpush1.msra.mxu0 0.0
  %564 = vmatprep.subr.mxu0 0.0
  %565 = vmatpush1.msra.mxu0 0.0
  %566 = vmatprep.subr.mxu0 0.0
  %567 = vmatpush1.msra.mxu0 0.0
  %568 = vmatprep.subr.mxu0 0.0
  %569 = vmatpush1.msra.mxu0 0.0
  %570 = vmatprep.subr.mxu0 0.0
  %571 = vmatpush1.msra.mxu0 0.0
  %572 = vmatprep.subr.mxu0 0.0
  %573 = vmatpush1.msra.mxu0 0.0
  %574 = vmatprep.subr.mxu0 0.0
  %575 = vmatpush1.msra.mxu0 0.0
  %576 = vmatprep.subr.mxu0 0.0
  %577 = vmatpush1.msra.mxu0 0.0
  %578 = vmatprep.subr.mxu0 0.0
  %579 = vmatpush1.msra.mxu0 0.0
  %580 = vmatprep.subr.mxu0 0.0
  %581 = vmatpush1.msra.mxu0 0.0
  %582 = vmatprep.subr.mxu0 0.0
  %583 = vmatpush1.msra.mxu0 0.0
  %584 = vmatprep.subr.mxu0 0.0
  %585 = vmatpush1.msra.mxu0 0.0
  %586 = vmatprep.subr.mxu0 0.0
  %587 = vmatpush1.msra.mxu0 0.0
  %588 = vmatprep.subr.mxu0 0.0
  %589 = vmatpush1.msra.mxu0 %v540
  %590 = vmatprep.subr.mxu0 0.0
  %591 = vmatpush1.msra.mxu0 %v535
  %592 = vmatprep.subr.mxu0 0.0
  %593 = vmatpush2.msra.mxu0 0.0
  %594 = vmatprep.subr.mxu0 0.0
  %595 = vmatpush2.msra.mxu0 0.0
  %596 = vmatprep.subr.mxu0 0.0
  %597 = vmatpush2.msra.mxu0 0.0
  %598 = vmatprep.subr.mxu0 0.0
  %599 = vmatpush2.msra.mxu0 0.0
  %600 = vmatprep.subr.mxu0 0.0
  %601 = vmatpush2.msra.mxu0 0.0
  %602 = vmatprep.subr.mxu0 0.0
  %603 = vmatpush2.msra.mxu0 0.0
  %604 = vmatprep.subr.mxu0 0.0
  %605 = vmatpush2.msra.mxu0 0.0
  %606 = vmatprep.subr.mxu0 0.0
  %607 = vmatpush2.msra.mxu0 0.0
  %608 = vmatprep.subr.mxu0 0.0
  %609 = vmatpush2.msra.mxu0 0.0
  %610 = vmatprep.subr.mxu0 0.0
  %611 = vmatpush2.msra.mxu0 0.0
  %612 = vmatprep.subr.mxu0 0.0
  %613 = vmatpush2.msra.mxu0 0.0
  %614 = vmatprep.subr.mxu0 0.0
  %615 = vmatpush2.msra.mxu0 0.0
  %616 = vmatprep.subr.mxu0 0.0
  %617 = vmatpush2.msra.mxu0 0.0
  %618 = vmatprep.subr.mxu0 0.0
  %619 = vmatpush2.msra.mxu0 0.0
  %620 = vmatprep.subr.mxu0 0.0
  %621 = vmatpush2.msra.mxu0 0.0
  %622 = vmatprep.subr.mxu0 0.0
  %623 = vmatpush2.msra.mxu0 0.0
  %624 = vmatprep.mubr.f32.mxu0 0.0
  %625 = vmatmul.mubr.f32.gmra.mxu0 %v549
  %v626 = vpop.f32.mrf.mxu0
  %v627 = vadd.f32 0.0, %v626
  %v628 = vpop.f32.mrf.mxu0
  %629 = vmatprep.mubr.f32.mxu0 0.0
  %630 = vmatmul.mubr.f32.gmra.mxu0 %v552
  %v631 = vpop.f32.mrf.mxu0
  %v632 = vadd.f32 0.0, %v631
  %v633 = vpop.f32.mrf.mxu0
  %634 = vmatprep.mubr.f32.mxu0 0.0
  %635 = vmatmul.mubr.f32.gmra.mxu0 %v555
  %v636 = vpop.f32.mrf.mxu0
  %v637 = vadd.f32 0.0, %v636
  %v638 = vpop.f32.mrf.mxu0
  %639 = vmatprep.mubr.f32.mxu0 0.0
  %640 = vmatmul.mubr.f32.gmra.mxu0 %v558
  %v641 = vpop.f32.mrf.mxu0
  %v642 = vadd.f32 0.0, %v641
  %v643 = vpop.f32.mrf.mxu0
  %644 = vdwg.mxu0
  %645 = vst.msk [vmem:[#allocation4] sm:$0xff] %vm547, %v627
  %646 = vst.msk [vmem:[#allocation4 + $0x8] sm:$0xff] %vm547, %v632
  %647 = vst.msk [vmem:[#allocation4 + $0x10] sm:$0xff] %vm547, %v637
  %648 = vst.msk [vmem:[#allocation4 + $0x18] sm:$0xff] %vm547, %v642
  %v649 = vld [vmem:[#allocation4] sm:$0x1]
  %v650 = vlaneseq
  %vm651 = vcmp.ge.s32.totalorder %v650, 0
  %vm652 = vcmp.lt.s32.totalorder %v650, 16
  %vm653 = vmand %vm651, %vm652
  %654 = vst.msk [vmem:[#allocation5] sm:$0x1] %vm653, %v649
  %v655 = vld [vmem:[#allocation4 + $0x1] sm:$0x1]
  %v658 = vunpack.c.l.s4 1966171168
  %v659 = vunpack.c.0.s8 %v658
  %v660 = vlaneseq
  %v661 = vshrl.u32 %v660, 7
  %v662 = vsub.s32 %v659, %v661
  %v663 = vrot.slane %v655, %v662
  %v665 = vunpack.c.l.s4 1966171168
  %v666 = vunpack.c.0.s8 %v665
  %v667 = vlaneseq
  %v668 = vshrl.u32 %v667, 7
  %v669 = vsub.s32 %v666, %v668
  %v670 = vrot.slane %v663, %v669
  %671 = vrot.lane.b32.xlu0 %v670, 16
  %v672 = vpop.permute.xlu0 %671
  %vm674 = vcmp.ge.s32.totalorder %v650, 16
  %vm675 = vcmp.lt.s32.totalorder %v650, 32
  %vm676 = vmand %vm674, %vm675
  %677 = vst.msk [vmem:[#allocation5] sm:$0x1] %vm676, %v672
  %v678 = vld [vmem:[#allocation4 + $0x2] sm:$0x1]
  %v681 = vunpack.c.l.s4 1966171168
  %v682 = vunpack.c.0.s8 %v681
  %v683 = vlaneseq
  %v684 = vshrl.u32 %v683, 7
  %v685 = vsub.s32 %v682, %v684
  %v686 = vrot.slane %v678, %v685
  %v688 = vunpack.c.l.s4 1966171168
  %v689 = vunpack.c.0.s8 %v688
  %v690 = vlaneseq
  %v691 = vshrl.u32 %v690, 7
  %v692 = vsub.s32 %v689, %v691
  %v693 = vrot.slane %v686, %v692
  %694 = vrot.lane.b32.xlu0 %v693, 32
  %v695 = vpop.permute.xlu0 %694
  %vm697 = vcmp.ge.s32.totalorder %v650, 32
  %vm698 = vcmp.lt.s32.totalorder %v650, 48
  %vm699 = vmand %vm697, %vm698
  %700 = vst.msk [vmem:[#allocation5] sm:$0x1] %vm699, %v695
  %v701 = vld [vmem:[#allocation4 + $0x3] sm:$0x1]
  %v704 = vunpack.c.l.s4 1966171168
  %v705 = vunpack.c.0.s8 %v704
  %v706 = vlaneseq
  %v707 = vshrl.u32 %v706, 7
  %v708 = vsub.s32 %v705, %v707
  %v709 = vrot.slane %v701, %v708
  %v711 = vunpack.c.l.s4 1966171168
  %v712 = vunpack.c.0.s8 %v711
  %v713 = vlaneseq
  %v714 = vshrl.u32 %v713, 7
  %v715 = vsub.s32 %v712, %v714
  %v716 = vrot.slane %v709, %v715
  %717 = vrot.lane.b32.xlu0 %v716, 48
  %v718 = vpop.permute.xlu0 %717
  %vm720 = vcmp.ge.s32.totalorder %v650, 48
  %vm721 = vcmp.lt.s32.totalorder %v650, 64
  %vm722 = vmand %vm720, %vm721
  %723 = vst.msk [vmem:[#allocation5] sm:$0x1] %vm722, %v718
  %v724 = vld [vmem:[#allocation4 + $0x4] sm:$0x1]
  %v727 = vunpack.c.l.s4 1966171168
  %v728 = vunpack.c.0.s8 %v727
  %v729 = vlaneseq
  %v730 = vshrl.u32 %v729, 7
  %v731 = vsub.s32 %v728, %v730
  %v732 = vrot.slane %v724, %v731
  %v734 = vunpack.c.l.s4 1966171168
  %v735 = vunpack.c.0.s8 %v734
  %v736 = vlaneseq
  %v737 = vshrl.u32 %v736, 7
  %v738 = vsub.s32 %v735, %v737
  %v739 = vrot.slane %v732, %v738
  %740 = vrot.lane.b32.xlu0 %v739, 64
  %v741 = vpop.permute.xlu0 %740
  %vm743 = vcmp.ge.s32.totalorder %v650, 64
  %vm744 = vcmp.lt.s32.totalorder %v650, 80
  %vm745 = vmand %vm743, %vm744
  %746 = vst.msk [vmem:[#allocation5] sm:$0x1] %vm745, %v741
  %v747 = vld [vmem:[#allocation4 + $0x5] sm:$0x1]
  %v750 = vunpack.c.l.s4 1966171168
  %v751 = vunpack.c.0.s8 %v750
  %v752 = vlaneseq
  %v753 = vshrl.u32 %v752, 7
  %v754 = vsub.s32 %v751, %v753
  %v755 = vrot.slane %v747, %v754
  %v757 = vunpack.c.l.s4 1966171168
  %v758 = vunpack.c.0.s8 %v757
  %v759 = vlaneseq
  %v760 = vshrl.u32 %v759, 7
  %v761 = vsub.s32 %v758, %v760
  %v762 = vrot.slane %v755, %v761
  %763 = vrot.lane.b32.xlu0 %v762, 80
  %v764 = vpop.permute.xlu0 %763
  %vm766 = vcmp.ge.s32.totalorder %v650, 80
  %vm767 = vcmp.lt.s32.totalorder %v650, 96
  %vm768 = vmand %vm766, %vm767
  %769 = vst.msk [vmem:[#allocation5] sm:$0x1] %vm768, %v764
  %v770 = vld [vmem:[#allocation4 + $0x6] sm:$0x1]
  %v773 = vunpack.c.l.s4 1966171168
  %v774 = vunpack.c.0.s8 %v773
  %v775 = vlaneseq
  %v776 = vshrl.u32 %v775, 7
  %v777 = vsub.s32 %v774, %v776
  %v778 = vrot.slane %v770, %v777
  %v780 = vunpack.c.l.s4 1966171168
  %v781 = vunpack.c.0.s8 %v780
  %v782 = vlaneseq
  %v783 = vshrl.u32 %v782, 7
  %v784 = vsub.s32 %v781, %v783
  %v785 = vrot.slane %v778, %v784
  %786 = vrot.lane.b32.xlu0 %v785, 96
  %v787 = vpop.permute.xlu0 %786
  %vm789 = vcmp.ge.s32.totalorder %v650, 96
  %vm790 = vcmp.lt.s32.totalorder %v650, 112
  %vm791 = vmand %vm789, %vm790
  %792 = vst.msk [vmem:[#allocation5] sm:$0x1] %vm791, %v787
  %v793 = vld [vmem:[#allocation4 + $0x7] sm:$0x1]
  %v796 = vunpack.c.l.s4 1966171168
  %v797 = vunpack.c.0.s8 %v796
  %v798 = vlaneseq
  %v799 = vshrl.u32 %v798, 7
  %v800 = vsub.s32 %v797, %v799
  %v801 = vrot.slane %v793, %v800
  %v803 = vunpack.c.l.s4 1966171168
  %v804 = vunpack.c.0.s8 %v803
  %v805 = vlaneseq
  %v806 = vshrl.u32 %v805, 7
  %v807 = vsub.s32 %v804, %v806
  %v808 = vrot.slane %v801, %v807
  %809 = vrot.lane.b32.xlu0 %v808, 112
  %v810 = vpop.permute.xlu0 %809
  %vm812 = vcmp.ge.s32.totalorder %v650, 112
  %vm813 = vcmp.lt.s32.totalorder %v650, 128
  %vm814 = vmand %vm812, %vm813
  %815 = vst.msk [vmem:[#allocation5] sm:$0x1] %vm814, %v810
  %v816 = vld [vmem:[#allocation4 + $0x8] sm:$0x1]
  %817 = vst.msk [vmem:[#allocation5 + $0x1] sm:$0x1] %vm653, %v816
  %v818 = vld [vmem:[#allocation4 + $0x9] sm:$0x1]
  %v821 = vunpack.c.l.s4 1966171168
  %v822 = vunpack.c.0.s8 %v821
  %v823 = vlaneseq
  %v824 = vshrl.u32 %v823, 7
  %v825 = vsub.s32 %v822, %v824
  %v826 = vrot.slane %v818, %v825
  %v828 = vunpack.c.l.s4 1966171168
  %v829 = vunpack.c.0.s8 %v828
  %v830 = vlaneseq
  %v831 = vshrl.u32 %v830, 7
  %v832 = vsub.s32 %v829, %v831
  %v833 = vrot.slane %v826, %v832
  %834 = vrot.lane.b32.xlu0 %v833, 16
  %v835 = vpop.permute.xlu0 %834
  %837 = vst.msk [vmem:[#allocation5 + $0x1] sm:$0x1] %vm676, %v835
  %v838 = vld [vmem:[#allocation4 + $0xa] sm:$0x1]
  %v841 = vunpack.c.l.s4 1966171168
  %v842 = vunpack.c.0.s8 %v841
  %v843 = vlaneseq
  %v844 = vshrl.u32 %v843, 7
  %v845 = vsub.s32 %v842, %v844
  %v846 = vrot.slane %v838, %v845
  %v848 = vunpack.c.l.s4 1966171168
  %v849 = vunpack.c.0.s8 %v848
  %v850 = vlaneseq
  %v851 = vshrl.u32 %v850, 7
  %v852 = vsub.s32 %v849, %v851
  %v853 = vrot.slane %v846, %v852
  %854 = vrot.lane.b32.xlu0 %v853, 32
  %v855 = vpop.permute.xlu0 %854
  %857 = vst.msk [vmem:[#allocation5 + $0x1] sm:$0x1] %vm699, %v855
  %v858 = vld [vmem:[#allocation4 + $0xb] sm:$0x1]
  %v861 = vunpack.c.l.s4 1966171168
  %v862 = vunpack.c.0.s8 %v861
  %v863 = vlaneseq
  %v864 = vshrl.u32 %v863, 7
  %v865 = vsub.s32 %v862, %v864
  %v866 = vrot.slane %v858, %v865
  %v868 = vunpack.c.l.s4 1966171168
  %v869 = vunpack.c.0.s8 %v868
  %v870 = vlaneseq
  %v871 = vshrl.u32 %v870, 7
  %v872 = vsub.s32 %v869, %v871
  %v873 = vrot.slane %v866, %v872
  %874 = vrot.lane.b32.xlu0 %v873, 48
  %v875 = vpop.permute.xlu0 %874
  %877 = vst.msk [vmem:[#allocation5 + $0x1] sm:$0x1] %vm722, %v875
  %v878 = vld [vmem:[#allocation4 + $0xc] sm:$0x1]
  %v881 = vunpack.c.l.s4 1966171168
  %v882 = vunpack.c.0.s8 %v881
  %v883 = vlaneseq
  %v884 = vshrl.u32 %v883, 7
  %v885 = vsub.s32 %v882, %v884
  %v886 = vrot.slane %v878, %v885
  %v888 = vunpack.c.l.s4 1966171168
  %v889 = vunpack.c.0.s8 %v888
  %v890 = vlaneseq
  %v891 = vshrl.u32 %v890, 7
  %v892 = vsub.s32 %v889, %v891
  %v893 = vrot.slane %v886, %v892
  %894 = vrot.lane.b32.xlu0 %v893, 64
  %v895 = vpop.permute.xlu0 %894
  %897 = vst.msk [vmem:[#allocation5 + $0x1] sm:$0x1] %vm745, %v895
  %v898 = vld [vmem:[#allocation4 + $0xd] sm:$0x1]
  %v901 = vunpack.c.l.s4 1966171168
  %v902 = vunpack.c.0.s8 %v901
  %v903 = vlaneseq
  %v904 = vshrl.u32 %v903, 7
  %v905 = vsub.s32 %v902, %v904
  %v906 = vrot.slane %v898, %v905
  %v908 = vunpack.c.l.s4 1966171168
  %v909 = vunpack.c.0.s8 %v908
  %v910 = vlaneseq
  %v911 = vshrl.u32 %v910, 7
  %v912 = vsub.s32 %v909, %v911
  %v913 = vrot.slane %v906, %v912
  %914 = vrot.lane.b32.xlu0 %v913, 80
  %v915 = vpop.permute.xlu0 %914
  %917 = vst.msk [vmem:[#allocation5 + $0x1] sm:$0x1] %vm768, %v915
  %v918 = vld [vmem:[#allocation4 + $0xe] sm:$0x1]
  %v921 = vunpack.c.l.s4 1966171168
  %v922 = vunpack.c.0.s8 %v921
  %v923 = vlaneseq
  %v924 = vshrl.u32 %v923, 7
  %v925 = vsub.s32 %v922, %v924
  %v926 = vrot.slane %v918, %v925
  %v928 = vunpack.c.l.s4 1966171168
  %v929 = vunpack.c.0.s8 %v928
  %v930 = vlaneseq
  %v931 = vshrl.u32 %v930, 7
  %v932 = vsub.s32 %v929, %v931
  %v933 = vrot.slane %v926, %v932
  %934 = vrot.lane.b32.xlu0 %v933, 96
  %v935 = vpop.permute.xlu0 %934
  %937 = vst.msk [vmem:[#allocation5 + $0x1] sm:$0x1] %vm791, %v935
  %v938 = vld [vmem:[#allocation4 + $0xf] sm:$0x1]
  %v941 = vunpack.c.l.s4 1966171168
  %v942 = vunpack.c.0.s8 %v941
  %v943 = vlaneseq
  %v944 = vshrl.u32 %v943, 7
  %v945 = vsub.s32 %v942, %v944
  %v946 = vrot.slane %v938, %v945
  %v948 = vunpack.c.l.s4 1966171168
  %v949 = vunpack.c.0.s8 %v948
  %v950 = vlaneseq
  %v951 = vshrl.u32 %v950, 7
  %v952 = vsub.s32 %v949, %v951
  %v953 = vrot.slane %v946, %v952
  %954 = vrot.lane.b32.xlu0 %v953, 112
  %v955 = vpop.permute.xlu0 %954
  %957 = vst.msk [vmem:[#allocation5 + $0x1] sm:$0x1] %vm814, %v955
  %v958 = vld [vmem:[#allocation4 + $0x10] sm:$0x1]
  %959 = vst.msk [vmem:[#allocation5 + $0x2] sm:$0x1] %vm653, %v958
  %v960 = vld [vmem:[#allocation4 + $0x11] sm:$0x1]
  %v963 = vunpack.c.l.s4 1966171168
  %v964 = vunpack.c.0.s8 %v963
  %v965 = vlaneseq
  %v966 = vshrl.u32 %v965, 7
  %v967 = vsub.s32 %v964, %v966
  %v968 = vrot.slane %v960, %v967
  %v970 = vunpack.c.l.s4 1966171168
  %v971 = vunpack.c.0.s8 %v970
  %v972 = vlaneseq
  %v973 = vshrl.u32 %v972, 7
  %v974 = vsub.s32 %v971, %v973
  %v975 = vrot.slane %v968, %v974
  %976 = vrot.lane.b32.xlu0 %v975, 16
  %v977 = vpop.permute.xlu0 %976
  %979 = vst.msk [vmem:[#allocation5 + $0x2] sm:$0x1] %vm676, %v977
  %v980 = vld [vmem:[#allocation4 + $0x12] sm:$0x1]
  %v983 = vunpack.c.l.s4 1966171168
  %v984 = vunpack.c.0.s8 %v983
  %v985 = vlaneseq
  %v986 = vshrl.u32 %v985, 7
  %v987 = vsub.s32 %v984, %v986
  %v988 = vrot.slane %v980, %v987
  %v990 = vunpack.c.l.s4 1966171168
  %v991 = vunpack.c.0.s8 %v990
  %v992 = vlaneseq
  %v993 = vshrl.u32 %v992, 7
  %v994 = vsub.s32 %v991, %v993
  %v995 = vrot.slane %v988, %v994
  %996 = vrot.lane.b32.xlu0 %v995, 32
  %v997 = vpop.permute.xlu0 %996
  %999 = vst.msk [vmem:[#allocation5 + $0x2] sm:$0x1] %vm699, %v997
  %v1000 = vld [vmem:[#allocation4 + $0x13] sm:$0x1]
  %v1003 = vunpack.c.l.s4 1966171168
  %v1004 = vunpack.c.0.s8 %v1003
  %v1005 = vlaneseq
  %v1006 = vshrl.u32 %v1005, 7
  %v1007 = vsub.s32 %v1004, %v1006
  %v1008 = vrot.slane %v1000, %v1007
  %v1010 = vunpack.c.l.s4 1966171168
  %v1011 = vunpack.c.0.s8 %v1010
  %v1012 = vlaneseq
  %v1013 = vshrl.u32 %v1012, 7
  %v1014 = vsub.s32 %v1011, %v1013
  %v1015 = vrot.slane %v1008, %v1014
  %1016 = vrot.lane.b32.xlu0 %v1015, 48
  %v1017 = vpop.permute.xlu0 %1016
  %1019 = vst.msk [vmem:[#allocation5 + $0x2] sm:$0x1] %vm722, %v1017
  %v1020 = vld [vmem:[#allocation4 + $0x14] sm:$0x1]
  %v1023 = vunpack.c.l.s4 1966171168
  %v1024 = vunpack.c.0.s8 %v1023
  %v1025 = vlaneseq
  %v1026 = vshrl.u32 %v1025, 7
  %v1027 = vsub.s32 %v1024, %v1026
  %v1028 = vrot.slane %v1020, %v1027
  %v1030 = vunpack.c.l.s4 1966171168
  %v1031 = vunpack.c.0.s8 %v1030
  %v1032 = vlaneseq
  %v1033 = vshrl.u32 %v1032, 7
  %v1034 = vsub.s32 %v1031, %v1033
  %v1035 = vrot.slane %v1028, %v1034
  %1036 = vrot.lane.b32.xlu0 %v1035, 64
  %v1037 = vpop.permute.xlu0 %1036
  %1039 = vst.msk [vmem:[#allocation5 + $0x2] sm:$0x1] %vm745, %v1037
  %v1040 = vld [vmem:[#allocation4 + $0x15] sm:$0x1]
  %v1043 = vunpack.c.l.s4 1966171168
  %v1044 = vunpack.c.0.s8 %v1043
  %v1045 = vlaneseq
  %v1046 = vshrl.u32 %v1045, 7
  %v1047 = vsub.s32 %v1044, %v1046
  %v1048 = vrot.slane %v1040, %v1047
  %v1050 = vunpack.c.l.s4 1966171168
  %v1051 = vunpack.c.0.s8 %v1050
  %v1052 = vlaneseq
  %v1053 = vshrl.u32 %v1052, 7
  %v1054 = vsub.s32 %v1051, %v1053
  %v1055 = vrot.slane %v1048, %v1054
  %1056 = vrot.lane.b32.xlu0 %v1055, 80
  %v1057 = vpop.permute.xlu0 %1056
  %1059 = vst.msk [vmem:[#allocation5 + $0x2] sm:$0x1] %vm768, %v1057
  %v1060 = vld [vmem:[#allocation4 + $0x16] sm:$0x1]
  %v1063 = vunpack.c.l.s4 1966171168
  %v1064 = vunpack.c.0.s8 %v1063
  %v1065 = vlaneseq
  %v1066 = vshrl.u32 %v1065, 7
  %v1067 = vsub.s32 %v1064, %v1066
  %v1068 = vrot.slane %v1060, %v1067
  %v1070 = vunpack.c.l.s4 1966171168
  %v1071 = vunpack.c.0.s8 %v1070
  %v1072 = vlaneseq
  %v1073 = vshrl.u32 %v1072, 7
  %v1074 = vsub.s32 %v1071, %v1073
  %v1075 = vrot.slane %v1068, %v1074
  %1076 = vrot.lane.b32.xlu0 %v1075, 96
  %v1077 = vpop.permute.xlu0 %1076
  %1079 = vst.msk [vmem:[#allocation5 + $0x2] sm:$0x1] %vm791, %v1077
  %v1080 = vld [vmem:[#allocation4 + $0x17] sm:$0x1]
  %v1083 = vunpack.c.l.s4 1966171168
  %v1084 = vunpack.c.0.s8 %v1083
  %v1085 = vlaneseq
  %v1086 = vshrl.u32 %v1085, 7
  %v1087 = vsub.s32 %v1084, %v1086
  %v1088 = vrot.slane %v1080, %v1087
  %v1090 = vunpack.c.l.s4 1966171168
  %v1091 = vunpack.c.0.s8 %v1090
  %v1092 = vlaneseq
  %v1093 = vshrl.u32 %v1092, 7
  %v1094 = vsub.s32 %v1091, %v1093
  %v1095 = vrot.slane %v1088, %v1094
  %1096 = vrot.lane.b32.xlu0 %v1095, 112
  %v1097 = vpop.permute.xlu0 %1096
  %1099 = vst.msk [vmem:[#allocation5 + $0x2] sm:$0x1] %vm814, %v1097
  %v1100 = vld [vmem:[#allocation4 + $0x18] sm:$0x1]
  %1101 = vst.msk [vmem:[#allocation5 + $0x3] sm:$0x1] %vm653, %v1100
  %v1102 = vld [vmem:[#allocation4 + $0x19] sm:$0x1]
  %v1105 = vunpack.c.l.s4 1966171168
  %v1106 = vunpack.c.0.s8 %v1105
  %v1107 = vlaneseq
  %v1108 = vshrl.u32 %v1107, 7
  %v1109 = vsub.s32 %v1106, %v1108
  %v1110 = vrot.slane %v1102, %v1109
  %v1112 = vunpack.c.l.s4 1966171168
  %v1113 = vunpack.c.0.s8 %v1112
  %v1114 = vlaneseq
  %v1115 = vshrl.u32 %v1114, 7
  %v1116 = vsub.s32 %v1113, %v1115
  %v1117 = vrot.slane %v1110, %v1116
  %1118 = vrot.lane.b32.xlu0 %v1117, 16
  %v1119 = vpop.permute.xlu0 %1118
  %1121 = vst.msk [vmem:[#allocation5 + $0x3] sm:$0x1] %vm676, %v1119
  %v1122 = vld [vmem:[#allocation4 + $0x1a] sm:$0x1]
  %v1125 = vunpack.c.l.s4 1966171168
  %v1126 = vunpack.c.0.s8 %v1125
  %v1127 = vlaneseq
  %v1128 = vshrl.u32 %v1127, 7
  %v1129 = vsub.s32 %v1126, %v1128
  %v1130 = vrot.slane %v1122, %v1129
  %v1132 = vunpack.c.l.s4 1966171168
  %v1133 = vunpack.c.0.s8 %v1132
  %v1134 = vlaneseq
  %v1135 = vshrl.u32 %v1134, 7
  %v1136 = vsub.s32 %v1133, %v1135
  %v1137 = vrot.slane %v1130, %v1136
  %1138 = vrot.lane.b32.xlu0 %v1137, 32
  %v1139 = vpop.permute.xlu0 %1138
  %1141 = vst.msk [vmem:[#allocation5 + $0x3] sm:$0x1] %vm699, %v1139
  %v1142 = vld [vmem:[#allocation4 + $0x1b] sm:$0x1]
  %v1145 = vunpack.c.l.s4 1966171168
  %v1146 = vunpack.c.0.s8 %v1145
  %v1147 = vlaneseq
  %v1148 = vshrl.u32 %v1147, 7
  %v1149 = vsub.s32 %v1146, %v1148
  %v1150 = vrot.slane %v1142, %v1149
  %v1152 = vunpack.c.l.s4 1966171168
  %v1153 = vunpack.c.0.s8 %v1152
  %v1154 = vlaneseq
  %v1155 = vshrl.u32 %v1154, 7
  %v1156 = vsub.s32 %v1153, %v1155
  %v1157 = vrot.slane %v1150, %v1156
  %1158 = vrot.lane.b32.xlu0 %v1157, 48
  %v1159 = vpop.permute.xlu0 %1158
  %1161 = vst.msk [vmem:[#allocation5 + $0x3] sm:$0x1] %vm722, %v1159
  %v1162 = vld [vmem:[#allocation4 + $0x1c] sm:$0x1]
  %v1165 = vunpack.c.l.s4 1966171168
  %v1166 = vunpack.c.0.s8 %v1165
  %v1167 = vlaneseq
  %v1168 = vshrl.u32 %v1167, 7
  %v1169 = vsub.s32 %v1166, %v1168
  %v1170 = vrot.slane %v1162, %v1169
  %v1172 = vunpack.c.l.s4 1966171168
  %v1173 = vunpack.c.0.s8 %v1172
  %v1174 = vlaneseq
  %v1175 = vshrl.u32 %v1174, 7
  %v1176 = vsub.s32 %v1173, %v1175
  %v1177 = vrot.slane %v1170, %v1176
  %1178 = vrot.lane.b32.xlu0 %v1177, 64
  %v1179 = vpop.permute.xlu0 %1178
  %1181 = vst.msk [vmem:[#allocation5 + $0x3] sm:$0x1] %vm745, %v1179
  %v1182 = vld [vmem:[#allocation4 + $0x1d] sm:$0x1]
  %v1185 = vunpack.c.l.s4 1966171168
  %v1186 = vunpack.c.0.s8 %v1185
  %v1187 = vlaneseq
  %v1188 = vshrl.u32 %v1187, 7
  %v1189 = vsub.s32 %v1186, %v1188
  %v1190 = vrot.slane %v1182, %v1189
  %v1192 = vunpack.c.l.s4 1966171168
  %v1193 = vunpack.c.0.s8 %v1192
  %v1194 = vlaneseq
  %v1195 = vshrl.u32 %v1194, 7
  %v1196 = vsub.s32 %v1193, %v1195
  %v1197 = vrot.slane %v1190, %v1196
  %1198 = vrot.lane.b32.xlu0 %v1197, 80
  %v1199 = vpop.permute.xlu0 %1198
  %1201 = vst.msk [vmem:[#allocation5 + $0x3] sm:$0x1] %vm768, %v1199
  %v1202 = vld [vmem:[#allocation4 + $0x1e] sm:$0x1]
  %v1205 = vunpack.c.l.s4 1966171168
  %v1206 = vunpack.c.0.s8 %v1205
  %v1207 = vlaneseq
  %v1208 = vshrl.u32 %v1207, 7
  %v1209 = vsub.s32 %v1206, %v1208
  %v1210 = vrot.slane %v1202, %v1209
  %v1212 = vunpack.c.l.s4 1966171168
  %v1213 = vunpack.c.0.s8 %v1212
  %v1214 = vlaneseq
  %v1215 = vshrl.u32 %v1214, 7
  %v1216 = vsub.s32 %v1213, %v1215
  %v1217 = vrot.slane %v1210, %v1216
  %1218 = vrot.lane.b32.xlu0 %v1217, 96
  %v1219 = vpop.permute.xlu0 %1218
  %1221 = vst.msk [vmem:[#allocation5 + $0x3] sm:$0x1] %vm791, %v1219
  %v1222 = vld [vmem:[#allocation4 + $0x1f] sm:$0x1]
  %v1225 = vunpack.c.l.s4 1966171168
  %v1226 = vunpack.c.0.s8 %v1225
  %v1227 = vlaneseq
  %v1228 = vshrl.u32 %v1227, 7
  %v1229 = vsub.s32 %v1226, %v1228
  %v1230 = vrot.slane %v1222, %v1229
  %v1232 = vunpack.c.l.s4 1966171168
  %v1233 = vunpack.c.0.s8 %v1232
  %v1234 = vlaneseq
  %v1235 = vshrl.u32 %v1234, 7
  %v1236 = vsub.s32 %v1233, %v1235
  %v1237 = vrot.slane %v1230, %v1236
  %1238 = vrot.lane.b32.xlu0 %v1237, 112
  %v1239 = vpop.permute.xlu0 %1238
  %1241 = vst.msk [vmem:[#allocation5 + $0x3] sm:$0x1] %vm814, %v1239
  %v1242 = vld [vmem:[#allocation5] sm:$0xf]
  %v1244 = vlaneseq
  %v1245 = vshrl.u32 %v1244, 7
  %v1246 = vsub.s32 0, %v1245
  %v1247 = vrot.slane %v1242, %v1246
  %v1248 = vlaneseq
  %v1249 = vshrl.u32 %v1248, 7
  %v1250 = vsub.s32 1, %v1249
  %v1251 = vrot.slane %v1242, %v1250
  %v1252 = vlaneseq
  %v1253 = vshrl.u32 %v1252, 7
  %v1254 = vsub.s32 2, %v1253
  %v1255 = vrot.slane %v1242, %v1254
  %v1256 = vlaneseq
  %v1257 = vshrl.u32 %v1256, 7
  %v1258 = vsub.s32 3, %v1257
  %v1259 = vrot.slane %v1242, %v1258
  %v1264 = vmul.f32 %v117, %v1247
  %v1265 = vmul.f32 %v119, %v1251
  %v1266 = vmul.f32 %v158, %v1255
  %v1267 = vmul.f32 %v160, %v1259
  %v1268 = vld [vmem:[%s11] sm:$0xff]
  %1270 = vset.pattern.permute.xlu0 0
  %1271 = vperm.xlu0 %1270, %v1268
  %v1272 = vpop.permute.xlu0 %1271
  %v1274 = vmul.f32 %v1264, %v1272
  %v1275 = vmul.f32 %v1265, %v1272
  %v1276 = vmul.f32 %v1266, %v1272
  %v1277 = vmul.f32 %v1267, %v1272
  %v1278 = vld [vmem:[%s12] sm:$0xff]
  %1280 = vset.pattern.permute.xlu0 0
  %1281 = vperm.xlu0 %1280, %v1278
  %v1282 = vpop.permute.xlu0 %1281
  %v1284 = vadd.f32 %v1274, %v1282
  %v1285 = vadd.f32 %v1275, %v1282
  %v1286 = vadd.f32 %v1276, %v1282
  %v1287 = vadd.f32 %v1277, %v1282
  %v1288 = vpack.c.bf16 %v1284, %v1284
  %v1289 = vpack.c.bf16 %v1285, %v1285
  %v1290 = vpack.c.bf16 %v1286, %v1286
  %v1291 = vpack.c.bf16 %v1287, %v1287
  %v1296 = vunpack.c.l.b16 %v1288
  %v1297 = vunpack.c.l.b16 %v1289
  %v1298 = vunpack.c.l.b16 %v1290
  %v1299 = vunpack.c.l.b16 %v1291
  %v1300 = vpack.c.b16 %v1297, %v1296
  %v1301 = vpack.c.b16 %v1299, %v1298
  %1304 = vst [vmem:[%s13] sm:$0xff] %v1300
  %1305 = vst [vmem:[%s13 + $0x8] sm:$0xff] %v1301
  // Predicated region
  $region54: #{attention_block_forward.1} parent=0 // pred_check
    _
  $region55: #{attention_block_forward.1} parent=0 // pred_check_branch
    %1307 = sbr.rel (0) target = $region57
  $region56: #{attention_block_forward.1} parent=0 // pred_region
    _
  $region57: #{attention_block_forward.1} parent=0 // pred_fallthru
    _
  // Predicated region
  $region58: #{attention_block_forward.1} parent=0 // pred_check
    _
  $region59: #{attention_block_forward.1} parent=0 // pred_check_branch
    %1309 = sbr.rel (0) target = $region61
  $region60: #{attention_block_forward.1} parent=0 // pred_region
    _
  $region61: #{attention_block_forward.1} parent=0 // pred_fallthru
    _

</llo_original>
